<compile_context>
chip_gen: v5e
topology: v5e:2x2
jax: 0.10.0
libtpu: 0.0.40
codegen_flags: <defaults>
</compile_context>

<pallas_src>
import functools

import jax
import jax.numpy as jnp
from jax.experimental import pallas as pl
from jax.experimental.pallas import tpu as pltpu


# ----------------------------- Pallas kernels ------------------------------------

def _wx_bias_act_kernel(w_ref, x_ref, b_ref, o_ref, *, apply_relu):
    """Fast path: the whole K reduction fits one block.

    out(P, TM) = act(W(P, K) @ X(K, TM) + b(P, 1)); f32 MXU accumulate, f32 bias/ReLU
    epilogue, cast to o_ref.dtype (bf16 between layers) at the single store.
    """
    out = jnp.dot(w_ref[...], x_ref[...], preferred_element_type=jnp.float32)
    out = out + b_ref[...]                      # (P, TM) + (P, 1) lane broadcast
    if apply_relu:
        out = jnp.maximum(out, 0.0)
    o_ref[...] = out.astype(o_ref.dtype)


def _wx_bias_act_acc_kernel(w_ref, x_ref, b_ref, o_ref, acc_ref, *, apply_relu):
    """Fallback for K too large for one block: K tiled on grid axis 1 (reduction
    last), bias folded into the accumulator init, ReLU + cast only in the finalize."""
    k = pl.program_id(1)

    @pl.when(k == 0)
    def _():
        acc_ref[...] = jnp.broadcast_to(b_ref[...], acc_ref.shape)

    acc_ref[...] += jnp.dot(w_ref[...], x_ref[...],
                            preferred_element_type=jnp.float32)

    @pl.when(k == pl.num_programs(1) - 1)
    def _():
        out = acc_ref[...]
        if apply_relu:
            out = jnp.maximum(out, 0.0)
        o_ref[...] = out.astype(o_ref.dtype)


# ----------------------------- tiling helpers ------------------------------------

_TK_MAX = 2048   # single-K-block threshold (bf16 X block <= 2048 * TM * 2 bytes)


def _round_up(v, m):
    return ((v + m - 1) // m) * m


def _tm_cap():
    # Bigger lane tiles on v5e/v6e (128 MiB VMEM); conservative on v7x (64 MiB / TC).
    try:
        info = pltpu.get_tpu_info()
        if getattr(info, "vmem_capacity_bytes", 0) >= (96 << 20):
            return 1024
    except Exception:
        pass
    return 512


def _pick_tm(Mp0):
    """Mp0 = M rounded up to 128.  Keep >= 2 M tiles once M is big enough so the
    'parallel' lane axis can be split across v7x's two TensorCores."""
    if Mp0 <= 256:
        return Mp0
    return min(_tm_cap(), max(128, _round_up(Mp0 // 2, 128)))


# ----------------------------- matmul wrappers ------------------------------------

def wx_bias_act(w, x, b, apply_relu, out_dtype):
    """Pallas-backed act(w @ x + b[:, None]).

    w: (P, K)   x: (K, M)   b: (P,)  ->  (P, M) in out_dtype.
    P (Cout / n_classes, small) is padded to 16 sublanes, M (pixels) to 128 lanes,
    K to 16 sublanes; operands are bf16, accumulation f32, padding sliced off.
    """
    P, K = w.shape
    K2, M = x.shape
    assert K == K2 and b.shape == (P,)

    Pp = _round_up(P, 16)
    Mp0 = _round_up(M, 128)
    TM = _pick_tm(Mp0)
    Mp = _round_up(Mp0, TM)
    Kp = _round_up(K, 16)
    if Kp > _TK_MAX:
        TK = _TK_MAX
        Kp = _round_up(K, TK)
    else:
        TK = Kp

    wp = jnp.pad(w.astype(jnp.bfloat16), ((0, Pp - P), (0, Kp - K)))
    xp = jnp.pad(x.astype(jnp.bfloat16), ((0, Kp - K), (0, Mp - M)))
    bp = jnp.pad(b.astype(jnp.float32), (0, Pp - P)).reshape(Pp, 1)

    if Kp == TK:
        # Single-K-step fast path: no accumulator scratch, no init/finalize passes.
        out = pl.pallas_call(
            functools.partial(_wx_bias_act_kernel, apply_relu=apply_relu),
            out_shape=jax.ShapeDtypeStruct((Pp, Mp), out_dtype),
            grid_spec=pltpu.PrefetchScalarGridSpec(
                num_scalar_prefetch=0,
                grid=(Mp // TM,),
                in_specs=[
                    pl.BlockSpec((Pp, Kp), lambda i: (0, 0)),
                    pl.BlockSpec((Kp, TM), lambda i: (0, i)),
                    pl.BlockSpec((Pp, 1), lambda i: (0, 0)),
                ],
                out_specs=pl.BlockSpec((Pp, TM), lambda i: (0, i)),
            ),
            compiler_params=pltpu.CompilerParams(
                dimension_semantics=("parallel",),
                vmem_limit_bytes=32 * 1024 * 1024,
            ),
        )(wp, xp, bp)
    else:
        out = pl.pallas_call(
            functools.partial(_wx_bias_act_acc_kernel, apply_relu=apply_relu),
            out_shape=jax.ShapeDtypeStruct((Pp, Mp), out_dtype),
            grid_spec=pltpu.PrefetchScalarGridSpec(
                num_scalar_prefetch=0,
                grid=(Mp // TM, Kp // TK),
                in_specs=[
                    pl.BlockSpec((Pp, TK), lambda i, k: (0, k)),
                    pl.BlockSpec((TK, TM), lambda i, k: (k, i)),
                    pl.BlockSpec((Pp, 1), lambda i, k: (0, 0)),
                ],
                out_specs=pl.BlockSpec((Pp, TM), lambda i, k: (0, i)),
                scratch_shapes=[pltpu.VMEM((Pp, TM), jnp.float32)],
            ),
            compiler_params=pltpu.CompilerParams(
                dimension_semantics=("parallel", "arbitrary"),
                vmem_limit_bytes=32 * 1024 * 1024,
            ),
        )(wp, xp, bp)
    return out[:P, :M]


def wx_bias_act_ref(w, x, b, apply_relu, out_dtype):
    """Pure-JAX reference with the same bf16-operand / f32-accumulate / out_dtype chain."""
    out = jnp.dot(w.astype(jnp.bfloat16), x.astype(jnp.bfloat16),
                  preferred_element_type=jnp.float32)
    out = out + b.astype(jnp.float32)[:, None]
    if apply_relu:
        out = jnp.maximum(out, 0.0)
    return out.astype(out_dtype)


# ----------------------------- conv3d via transposed im2col -----------------------

def conv3d_cf(x, w, b, stride, padding, dilation, apply_relu, use_pallas=True):
    """Conv3d on activations stored as (Cin, N, D, H, W) (bf16).

    w: (Cout, Cin, kd, kh, kw) torch layout, b: (Cout,).
    Returns (Cout, N, Do, Ho, Wo) bf16.  The im2col builds the transposed patches
    matrix (K, M) = (taps*Cin, N*Do*Ho*Wo) with pure slicing + one concat, so the
    big pixel dim lands on the lane axis of the Pallas matmul with no transposes.
    """
    Cin, Nb, D, H, W = x.shape
    Cout, Cin2, kd, kh, kw = w.shape
    assert Cin == Cin2
    sd, sh, sw = stride
    pd, ph, pw = padding
    dd, dh, dw = dilation

    xp = jnp.pad(x, ((0, 0), (0, 0), (pd, pd), (ph, ph), (pw, pw)))
    Dp, Hp, Wp = D + 2 * pd, H + 2 * ph, W + 2 * pw
    kde, khe, kwe = dd * (kd - 1) + 1, dh * (kh - 1) + 1, dw * (kw - 1) + 1
    Do = (Dp - kde) // sd + 1
    Ho = (Hp - khe) // sh + 1
    Wo = (Wp - kwe) // sw + 1

    cols = []
    for ikd in range(kd):
        for ikh in range(kh):
            for ikw in range(kw):
                d0, h0, w0 = ikd * dd, ikh * dh, ikw * dw
                cols.append(xp[:, :,
                               d0:d0 + sd * (Do - 1) + 1:sd,
                               h0:h0 + sh * (Ho - 1) + 1:sh,
                               w0:w0 + sw * (Wo - 1) + 1:sw])
    patches = jnp.concatenate(cols, axis=0)                   # (taps*Cin, N,Do,Ho,Wo)
    patches = patches.reshape(kd * kh * kw * Cin, Nb * Do * Ho * Wo)   # (K, M)

    # weight -> (Cout, K) with K ordered (kd, kh, kw, Cin) to match `patches`.
    w_mat = jnp.transpose(w, (0, 2, 3, 4, 1)).reshape(Cout, kd * kh * kw * Cin)

    mm = wx_bias_act if use_pallas else wx_bias_act_ref
    out = mm(w_mat, patches, b, apply_relu, jnp.bfloat16)     # (Cout, M)
    return out.reshape(Cout, Nb, Do, Ho, Wo)


# ----------------------------- model: params + forward --------------------------

def _out_dim(d, k, s, p, dil=1):
    return (d + 2 * p - (dil * (k - 1) + 1)) // s + 1


def features_size(input_channels, patch_size, dilation=1):
    pad1 = 1 if patch_size == 3 else 0
    D = _out_dim(input_channels, 3, 1, pad1, dilation)
    H = _out_dim(patch_size, 3, 1, pad1)
    W = H
    D = _out_dim(D, 3, 2, 1, dilation)                 # pool1
    D = _out_dim(D, 3, 1, 1, dilation)                 # conv2 (depth)
    H = _out_dim(H, 3, 1, 0); W = H                    # conv2 (spatial)
    D = _out_dim(D, 3, 2, 1, dilation)                 # pool2
    D = _out_dim(D, 3, 1, 1, dilation)                 # conv3
    D = _out_dim(D, 2, 2, 1, dilation)                 # conv4
    return 35 * D * H * W


def _kaiming_normal(key, shape, fan_in):
    # matches torch init.kaiming_normal_ defaults: gain=sqrt(2), mode=fan_in
    return ((2.0 / fan_in) ** 0.5) * jax.random.normal(key, shape, dtype=jnp.float32)


def init_params(key, input_channels, n_classes, patch_size=5, dilation=1):
    ks = jax.random.split(key, 7)

    def conv(k, cout, cin, kd, kh, kw):
        return (_kaiming_normal(k, (cout, cin, kd, kh, kw), cin * kd * kh * kw),
                jnp.zeros((cout,), jnp.float32))

    p = {}
    p["conv1_w"], p["conv1_b"] = conv(ks[0], 20, 1, 3, 3, 3)
    p["pool1_w"], p["pool1_b"] = conv(ks[1], 20, 20, 3, 1, 1)
    p["conv2_w"], p["conv2_b"] = conv(ks[2], 35, 20, 3, 3, 3)
    p["pool2_w"], p["pool2_b"] = conv(ks[3], 35, 35, 3, 1, 1)
    p["conv3_w"], p["conv3_b"] = conv(ks[4], 35, 35, 3, 1, 1)
    p["conv4_w"], p["conv4_b"] = conv(ks[5], 35, 35, 2, 1, 1)
    feats = features_size(input_channels, patch_size, dilation)
    p["fc_w"] = _kaiming_normal(ks[6], (n_classes, feats), feats)   # torch Linear layout
    p["fc_b"] = jnp.zeros((n_classes,), jnp.float32)
    return p, feats


def forward(params, x, patch_size=5, dilation=1, use_pallas=True):
    """x: (N, 1, patch, patch, bands), exactly as the torch module's forward input."""
    dil = (dilation, 1, 1)
    # torch permutes to NCDHW (N,1,bands,patch,patch); we keep (C, N, D, H, W)
    # internally (one transpose at entry, one at the FC) and cast to bf16 ONCE here
    # so all im2col slices / patches / kernel operands stay bf16.
    x = jnp.transpose(x, (1, 0, 4, 2, 3)).astype(jnp.bfloat16)
    pad1 = (1, 1, 1) if patch_size == 3 else (0, 0, 0)

    x = conv3d_cf(x, params["conv1_w"], params["conv1_b"], (1, 1, 1), pad1, dil, True, use_pallas)
    x = conv3d_cf(x, params["pool1_w"], params["pool1_b"], (2, 1, 1), (1, 0, 0), dil, False, use_pallas)
    x = conv3d_cf(x, params["conv2_w"], params["conv2_b"], (1, 1, 1), (1, 0, 0), dil, True, use_pallas)
    x = conv3d_cf(x, params["pool2_w"], params["pool2_b"], (2, 1, 1), (1, 0, 0), dil, False, use_pallas)
    x = conv3d_cf(x, params["conv3_w"], params["conv3_b"], (1, 1, 1), (1, 0, 0), dil, True, use_pallas)
    x = conv3d_cf(x, params["conv4_w"], params["conv4_b"], (2, 1, 1), (1, 0, 0), dil, True, use_pallas)

    # torch flattens (N, C, D, H, W) -> (N, C*D*H*W); the FC reuses the same
    # W(P,K) @ X(K,M) kernel with X = feat^T (feats, batch), logits transposed back.
    C, Nb, D, H, W = x.shape
    feat_t = jnp.transpose(x, (0, 2, 3, 4, 1)).reshape(C * D * H * W, Nb)   # (feats, N)
    mm = wx_bias_act if use_pallas else wx_bias_act_ref
    logits_t = mm(params["fc_w"], feat_t, params["fc_b"], False, jnp.float32)  # (ncls, N)
    return logits_t.T


# ----------------------------- main ---------------------------------------------

if __name__ == "__main__":
    B, bands, patch, n_classes = 2, 16, 5, 10
    key = jax.random.PRNGKey(0)
    kx, kp = jax.random.split(key)

    x = jax.random.normal(kx, (B, 1, patch, patch, bands), dtype=jnp.float32)
    params, feats = init_params(kp, bands, n_classes, patch_size=patch)
    assert feats == 35 * 3  # sanity: matches torch _get_final_flattened_size for these dims

    fwd = jax.jit(functools.partial(forward, patch_size=patch, dilation=1, use_pallas=True))
    logits = jax.block_until_ready(fwd(params, x))
    assert logits.shape == (B, n_classes)

    # Same-precision pure-JAX reference (bf16 operands + bf16 activation chain,
    # f32 accumulate).  Tolerance is looser than v2 because intermediate activations
    # are now rounded to bf16, so a 1-ULP bf16 flip from MXU-vs-XLA accumulation
    # order can propagate a few 1e-3 into the logits.
    ref = forward(params, x, patch_size=patch, dilation=1, use_pallas=False)
    assert jnp.allclose(logits, ref, atol=2e-2, rtol=2e-2), float(jnp.max(jnp.abs(logits - ref)))

    print("KERNEL_OK")
</pallas_src>

<mosaic_0001>
module attributes {stable_mosaic.version = 11 : i64} {
  func.func @_wx_bias_act_kernel(%arg0: i32, %arg1: memref<32x32xbf16, #tpu.memory_space<vmem>>, %arg2: memref<32x256xbf16, #tpu.memory_space<vmem>>, %arg3: memref<32x1xf32, #tpu.memory_space<vmem>>, %arg4: memref<32x256xbf16, #tpu.memory_space<vmem>>) attributes {dimension_semantics = [#tpu.dimension_semantics<parallel>], iteration_bounds = array<i64: 1>, scalar_prefetch = 0 : i64, scratch_operands = 0 : i64, tpu.core_type = #tpu.core_type<tc>, window_params = [{pipeline_mode = #tpu.pipeline_mode<synchronous>, transform_indices = @transform_0, window_bounds = array<i64: 32, 32>}, {transform_indices = @transform_1, window_bounds = array<i64: 32, 256>}, {pipeline_mode = #tpu.pipeline_mode<synchronous>, transform_indices = @transform_2, window_bounds = array<i64: 32, 1>}, {transform_indices = @transform_3, window_bounds = array<i64: 32, 256>}]} {
    %c0 = arith.constant 0 : index
    %c0_0 = arith.constant 0 : index
    %0 = vector.load %arg1[%c0, %c0_0] : memref<32x32xbf16, #tpu.memory_space<vmem>>, vector<32x32xbf16>
    %c0_1 = arith.constant 0 : index
    %c0_2 = arith.constant 0 : index
    %1 = vector.load %arg2[%c0_1, %c0_2] : memref<32x256xbf16, #tpu.memory_space<vmem>>, vector<32x256xbf16>
    %cst = arith.constant dense<0.000000e+00> : vector<32x256xf32>
    %2 = tpu.matmul %0, %1, %cst {dimension_numbers = #tpu.dot_dimension_numbers<[1], [0], [0], [1], [0, 0, 1, 1], [], []>} : vector<32x32xbf16>, vector<32x256xbf16>, vector<32x256xf32> -> vector<32x256xf32>
    %c0_3 = arith.constant 0 : index
    %c0_4 = arith.constant 0 : index
    %3 = vector.load %arg3[%c0_3, %c0_4] : memref<32x1xf32, #tpu.memory_space<vmem>>, vector<32x1xf32>
    %4 = vector.broadcast %3 : vector<32x1xf32> to vector<32x256xf32>
    %5 = arith.addf %2, %4 : vector<32x256xf32>
    %cst_5 = arith.constant 0.000000e+00 : f32
    %6 = vector.broadcast %cst_5 : f32 to vector<32x256xf32>
    %7 = arith.maximumf %5, %6 : vector<32x256xf32>
    %8 = arith.truncf %7 : vector<32x256xf32> to vector<32x256xbf16>
    %c0_6 = arith.constant 0 : index
    %c0_7 = arith.constant 0 : index
    %9 = vector.load %arg4[%c0_6, %c0_7] : memref<32x256xbf16, #tpu.memory_space<vmem>>, vector<32x256xbf16>
    tpu.vector_store %arg4[%c0_6, %c0_7], %8 {strides = array<i32>} : memref<32x256xbf16, #tpu.memory_space<vmem>>, vector<32x256xbf16>,
    return
  }
  func.func @transform_0(%arg0: i32) -> (i32, i32) {
    %c0_i32 = arith.constant 0 : i32
    %c0_i32_0 = arith.constant 0 : i32
    %c0_i32_1 = arith.constant 0 : i32
    return %c0_i32, %c0_i32_0 : i32, i32
  }
  func.func @transform_1(%arg0: i32) -> (i32, i32) {
    %c0_i32 = arith.constant 0 : i32
    %c0_i32_0 = arith.constant 0 : i32
    return %c0_i32, %arg0 : i32, i32
  }
  func.func @transform_2(%arg0: i32) -> (i32, i32) {
    %c0_i32 = arith.constant 0 : i32
    %c0_i32_0 = arith.constant 0 : i32
    %c0_i32_1 = arith.constant 0 : i32
    return %c0_i32, %c0_i32_0 : i32, i32
  }
  func.func @transform_3(%arg0: i32) -> (i32, i32) {
    %c0_i32 = arith.constant 0 : i32
    %c0_i32_0 = arith.constant 0 : i32
    return %c0_i32, %arg0 : i32, i32
  }
}

module attributes {stable_mosaic.version = 11 : i64} {
  func.func @_wx_bias_act_kernel(%arg0: i32, %arg1: memref<32x64xbf16, #tpu.memory_space<vmem>>, %arg2: memref<64x128xbf16, #tpu.memory_space<vmem>>, %arg3: memref<32x1xf32, #tpu.memory_space<vmem>>, %arg4: memref<32x128xbf16, #tpu.memory_space<vmem>>) attributes {dimension_semantics = [#tpu.dimension_semantics<parallel>], iteration_bounds = array<i64: 1>, scalar_prefetch = 0 : i64, scratch_operands = 0 : i64, tpu.core_type = #tpu.core_type<tc>, window_params = [{pipeline_mode = #tpu.pipeline_mode<synchronous>, transform_indices = @transform_0, window_bounds = array<i64: 32, 64>}, {transform_indices = @transform_1, window_bounds = array<i64: 64, 128>}, {pipeline_mode = #tpu.pipeline_mode<synchronous>, transform_indices = @transform_2, window_bounds = array<i64: 32, 1>}, {transform_indices = @transform_3, window_bounds = array<i64: 32, 128>}]} {
    %c0 = arith.constant 0 : index
    %c0_0 = arith.constant 0 : index
    %0 = vector.load %arg1[%c0, %c0_0] : memref<32x64xbf16, #tpu.memory_space<vmem>>, vector<32x64xbf16>
    %c0_1 = arith.constant 0 : index
    %c0_2 = arith.constant 0 : index
    %1 = vector.load %arg2[%c0_1, %c0_2] : memref<64x128xbf16, #tpu.memory_space<vmem>>, vector<64x128xbf16>
    %cst = arith.constant dense<0.000000e+00> : vector<32x128xf32>
    %2 = tpu.matmul %0, %1, %cst {dimension_numbers = #tpu.dot_dimension_numbers<[1], [0], [0], [1], [0, 0, 1, 1], [], []>} : vector<32x64xbf16>, vector<64x128xbf16>, vector<32x128xf32> -> vector<32x128xf32>
    %c0_3 = arith.constant 0 : index
    %c0_4 = arith.constant 0 : index
    %3 = vector.load %arg3[%c0_3, %c0_4] : memref<32x1xf32, #tpu.memory_space<vmem>>, vector<32x1xf32>
    %4 = vector.broadcast %3 : vector<32x1xf32> to vector<32x128xf32>
    %5 = arith.addf %2, %4 : vector<32x128xf32>
    %6 = arith.truncf %5 : vector<32x128xf32> to vector<32x128xbf16>
    %c0_5 = arith.constant 0 : index
    %c0_6 = arith.constant 0 : index
    %7 = vector.load %arg4[%c0_5, %c0_6] : memref<32x128xbf16, #tpu.memory_space<vmem>>, vector<32x128xbf16>
    tpu.vector_store %arg4[%c0_5, %c0_6], %6 {strides = array<i32>} : memref<32x128xbf16, #tpu.memory_space<vmem>>, vector<32x128xbf16>,
    return
  }
  func.func @transform_0(%arg0: i32) -> (i32, i32) {
    %c0_i32 = arith.constant 0 : i32
    %c0_i32_0 = arith.constant 0 : i32
    %c0_i32_1 = arith.constant 0 : i32
    return %c0_i32, %c0_i32_0 : i32, i32
  }
  func.func @transform_1(%arg0: i32) -> (i32, i32) {
    %c0_i32 = arith.constant 0 : i32
    %c0_i32_0 = arith.constant 0 : i32
    return %c0_i32, %arg0 : i32, i32
  }
  func.func @transform_2(%arg0: i32) -> (i32, i32) {
    %c0_i32 = arith.constant 0 : i32
    %c0_i32_0 = arith.constant 0 : i32
    %c0_i32_1 = arith.constant 0 : i32
    return %c0_i32, %c0_i32_0 : i32, i32
  }
  func.func @transform_3(%arg0: i32) -> (i32, i32) {
    %c0_i32 = arith.constant 0 : i32
    %c0_i32_0 = arith.constant 0 : i32
    return %c0_i32, %arg0 : i32, i32
  }
}

module attributes {stable_mosaic.version = 11 : i64} {
  func.func @_wx_bias_act_kernel(%arg0: i32, %arg1: memref<48x544xbf16, #tpu.memory_space<vmem>>, %arg2: memref<544x128xbf16, #tpu.memory_space<vmem>>, %arg3: memref<48x1xf32, #tpu.memory_space<vmem>>, %arg4: memref<48x128xbf16, #tpu.memory_space<vmem>>) attributes {dimension_semantics = [#tpu.dimension_semantics<parallel>], iteration_bounds = array<i64: 1>, scalar_prefetch = 0 : i64, scratch_operands = 0 : i64, tpu.core_type = #tpu.core_type<tc>, window_params = [{pipeline_mode = #tpu.pipeline_mode<synchronous>, transform_indices = @transform_0, window_bounds = array<i64: 48, 544>}, {transform_indices = @transform_1, window_bounds = array<i64: 544, 128>}, {pipeline_mode = #tpu.pipeline_mode<synchronous>, transform_indices = @transform_2, window_bounds = array<i64: 48, 1>}, {transform_indices = @transform_3, window_bounds = array<i64: 48, 128>}]} {
    %c0 = arith.constant 0 : index
    %c0_0 = arith.constant 0 : index
    %0 = vector.load %arg1[%c0, %c0_0] : memref<48x544xbf16, #tpu.memory_space<vmem>>, vector<48x544xbf16>
    %c0_1 = arith.constant 0 : index
    %c0_2 = arith.constant 0 : index
    %1 = vector.load %arg2[%c0_1, %c0_2] : memref<544x128xbf16, #tpu.memory_space<vmem>>, vector<544x128xbf16>
    %cst = arith.constant dense<0.000000e+00> : vector<48x128xf32>
    %2 = tpu.matmul %0, %1, %cst {dimension_numbers = #tpu.dot_dimension_numbers<[1], [0], [0], [1], [0, 0, 1, 1], [], []>} : vector<48x544xbf16>, vector<544x128xbf16>, vector<48x128xf32> -> vector<48x128xf32>
    %c0_3 = arith.constant 0 : index
    %c0_4 = arith.constant 0 : index
    %3 = vector.load %arg3[%c0_3, %c0_4] : memref<48x1xf32, #tpu.memory_space<vmem>>, vector<48x1xf32>
    %4 = vector.broadcast %3 : vector<48x1xf32> to vector<48x128xf32>
    %5 = arith.addf %2, %4 : vector<48x128xf32>
    %cst_5 = arith.constant 0.000000e+00 : f32
    %6 = vector.broadcast %cst_5 : f32 to vector<48x128xf32>
    %7 = arith.maximumf %5, %6 : vector<48x128xf32>
    %8 = arith.truncf %7 : vector<48x128xf32> to vector<48x128xbf16>
    %c0_6 = arith.constant 0 : index
    %c0_7 = arith.constant 0 : index
    %9 = vector.load %arg4[%c0_6, %c0_7] : memref<48x128xbf16, #tpu.memory_space<vmem>>, vector<48x128xbf16>
    tpu.vector_store %arg4[%c0_6, %c0_7], %8 {strides = array<i32>} : memref<48x128xbf16, #tpu.memory_space<vmem>>, vector<48x128xbf16>,
    return
  }
  func.func @transform_0(%arg0: i32) -> (i32, i32) {
    %c0_i32 = arith.constant 0 : i32
    %c0_i32_0 = arith.constant 0 : i32
    %c0_i32_1 = arith.constant 0 : i32
    return %c0_i32, %c0_i32_0 : i32, i32
  }
  func.func @transform_1(%arg0: i32) -> (i32, i32) {
    %c0_i32 = arith.constant 0 : i32
    %c0_i32_0 = arith.constant 0 : i32
    return %c0_i32, %arg0 : i32, i32
  }
  func.func @transform_2(%arg0: i32) -> (i32, i32) {
    %c0_i32 = arith.constant 0 : i32
    %c0_i32_0 = arith.constant 0 : i32
    %c0_i32_1 = arith.constant 0 : i32
    return %c0_i32, %c0_i32_0 : i32, i32
  }
  func.func @transform_3(%arg0: i32) -> (i32, i32) {
    %c0_i32 = arith.constant 0 : i32
    %c0_i32_0 = arith.constant 0 : i32
    return %c0_i32, %arg0 : i32, i32
  }
}

module attributes {stable_mosaic.version = 11 : i64} {
  func.func @_wx_bias_act_kernel(%arg0: i32, %arg1: memref<48x112xbf16, #tpu.memory_space<vmem>>, %arg2: memref<112x128xbf16, #tpu.memory_space<vmem>>, %arg3: memref<48x1xf32, #tpu.memory_space<vmem>>, %arg4: memref<48x128xbf16, #tpu.memory_space<vmem>>) attributes {dimension_semantics = [#tpu.dimension_semantics<parallel>], iteration_bounds = array<i64: 1>, scalar_prefetch = 0 : i64, scratch_operands = 0 : i64, tpu.core_type = #tpu.core_type<tc>, window_params = [{pipeline_mode = #tpu.pipeline_mode<synchronous>, transform_indices = @transform_0, window_bounds = array<i64: 48, 112>}, {transform_indices = @transform_1, window_bounds = array<i64: 112, 128>}, {pipeline_mode = #tpu.pipeline_mode<synchronous>, transform_indices = @transform_2, window_bounds = array<i64: 48, 1>}, {transform_indices = @transform_3, window_bounds = array<i64: 48, 128>}]} {
    %c0 = arith.constant 0 : index
    %c0_0 = arith.constant 0 : index
    %0 = vector.load %arg1[%c0, %c0_0] : memref<48x112xbf16, #tpu.memory_space<vmem>>, vector<48x112xbf16>
    %c0_1 = arith.constant 0 : index
    %c0_2 = arith.constant 0 : index
    %1 = vector.load %arg2[%c0_1, %c0_2] : memref<112x128xbf16, #tpu.memory_space<vmem>>, vector<112x128xbf16>
    %cst = arith.constant dense<0.000000e+00> : vector<48x128xf32>
    %2 = tpu.matmul %0, %1, %cst {dimension_numbers = #tpu.dot_dimension_numbers<[1], [0], [0], [1], [0, 0, 1, 1], [], []>} : vector<48x112xbf16>, vector<112x128xbf16>, vector<48x128xf32> -> vector<48x128xf32>
    %c0_3 = arith.constant 0 : index
    %c0_4 = arith.constant 0 : index
    %3 = vector.load %arg3[%c0_3, %c0_4] : memref<48x1xf32, #tpu.memory_space<vmem>>, vector<48x1xf32>
    %4 = vector.broadcast %3 : vector<48x1xf32> to vector<48x128xf32>
    %5 = arith.addf %2, %4 : vector<48x128xf32>
    %6 = arith.truncf %5 : vector<48x128xf32> to vector<48x128xbf16>
    %c0_5 = arith.constant 0 : index
    %c0_6 = arith.constant 0 : index
    %7 = vector.load %arg4[%c0_5, %c0_6] : memref<48x128xbf16, #tpu.memory_space<vmem>>, vector<48x128xbf16>
    tpu.vector_store %arg4[%c0_5, %c0_6], %6 {strides = array<i32>} : memref<48x128xbf16, #tpu.memory_space<vmem>>, vector<48x128xbf16>,
    return
  }
  func.func @transform_0(%arg0: i32) -> (i32, i32) {
    %c0_i32 = arith.constant 0 : i32
    %c0_i32_0 = arith.constant 0 : i32
    %c0_i32_1 = arith.constant 0 : i32
    return %c0_i32, %c0_i32_0 : i32, i32
  }
  func.func @transform_1(%arg0: i32) -> (i32, i32) {
    %c0_i32 = arith.constant 0 : i32
    %c0_i32_0 = arith.constant 0 : i32
    return %c0_i32, %arg0 : i32, i32
  }
  func.func @transform_2(%arg0: i32) -> (i32, i32) {
    %c0_i32 = arith.constant 0 : i32
    %c0_i32_0 = arith.constant 0 : i32
    %c0_i32_1 = arith.constant 0 : i32
    return %c0_i32, %c0_i32_0 : i32, i32
  }
  func.func @transform_3(%arg0: i32) -> (i32, i32) {
    %c0_i32 = arith.constant 0 : i32
    %c0_i32_0 = arith.constant 0 : i32
    return %c0_i32, %arg0 : i32, i32
  }
}

module attributes {stable_mosaic.version = 11 : i64} {
  func.func @_wx_bias_act_kernel(%arg0: i32, %arg1: memref<48x112xbf16, #tpu.memory_space<vmem>>, %arg2: memref<112x128xbf16, #tpu.memory_space<vmem>>, %arg3: memref<48x1xf32, #tpu.memory_space<vmem>>, %arg4: memref<48x128xbf16, #tpu.memory_space<vmem>>) attributes {dimension_semantics = [#tpu.dimension_semantics<parallel>], iteration_bounds = array<i64: 1>, scalar_prefetch = 0 : i64, scratch_operands = 0 : i64, tpu.core_type = #tpu.core_type<tc>, window_params = [{pipeline_mode = #tpu.pipeline_mode<synchronous>, transform_indices = @transform_0, window_bounds = array<i64: 48, 112>}, {transform_indices = @transform_1, window_bounds = array<i64: 112, 128>}, {pipeline_mode = #tpu.pipeline_mode<synchronous>, transform_indices = @transform_2, window_bounds = array<i64: 48, 1>}, {transform_indices = @transform_3, window_bounds = array<i64: 48, 128>}]} {
    %c0 = arith.constant 0 : index
    %c0_0 = arith.constant 0 : index
    %0 = vector.load %arg1[%c0, %c0_0] : memref<48x112xbf16, #tpu.memory_space<vmem>>, vector<48x112xbf16>
    %c0_1 = arith.constant 0 : index
    %c0_2 = arith.constant 0 : index
    %1 = vector.load %arg2[%c0_1, %c0_2] : memref<112x128xbf16, #tpu.memory_space<vmem>>, vector<112x128xbf16>
    %cst = arith.constant dense<0.000000e+00> : vector<48x128xf32>
    %2 = tpu.matmul %0, %1, %cst {dimension_numbers = #tpu.dot_dimension_numbers<[1], [0], [0], [1], [0, 0, 1, 1], [], []>} : vector<48x112xbf16>, vector<112x128xbf16>, vector<48x128xf32> -> vector<48x128xf32>
    %c0_3 = arith.constant 0 : index
    %c0_4 = arith.constant 0 : index
    %3 = vector.load %arg3[%c0_3, %c0_4] : memref<48x1xf32, #tpu.memory_space<vmem>>, vector<48x1xf32>
    %4 = vector.broadcast %3 : vector<48x1xf32> to vector<48x128xf32>
    %5 = arith.addf %2, %4 : vector<48x128xf32>
    %cst_5 = arith.constant 0.000000e+00 : f32
    %6 = vector.broadcast %cst_5 : f32 to vector<48x128xf32>
    %7 = arith.maximumf %5, %6 : vector<48x128xf32>
    %8 = arith.truncf %7 : vector<48x128xf32> to vector<48x128xbf16>
    %c0_6 = arith.constant 0 : index
    %c0_7 = arith.constant 0 : index
    %9 = vector.load %arg4[%c0_6, %c0_7] : memref<48x128xbf16, #tpu.memory_space<vmem>>, vector<48x128xbf16>
    tpu.vector_store %arg4[%c0_6, %c0_7], %8 {strides = array<i32>} : memref<48x128xbf16, #tpu.memory_space<vmem>>, vector<48x128xbf16>,
    return
  }
  func.func @transform_0(%arg0: i32) -> (i32, i32) {
    %c0_i32 = arith.constant 0 : i32
    %c0_i32_0 = arith.constant 0 : i32
    %c0_i32_1 = arith.constant 0 : i32
    return %c0_i32, %c0_i32_0 : i32, i32
  }
  func.func @transform_1(%arg0: i32) -> (i32, i32) {
    %c0_i32 = arith.constant 0 : i32
    %c0_i32_0 = arith.constant 0 : i32
    return %c0_i32, %arg0 : i32, i32
  }
  func.func @transform_2(%arg0: i32) -> (i32, i32) {
    %c0_i32 = arith.constant 0 : i32
    %c0_i32_0 = arith.constant 0 : i32
    %c0_i32_1 = arith.constant 0 : i32
    return %c0_i32, %c0_i32_0 : i32, i32
  }
  func.func @transform_3(%arg0: i32) -> (i32, i32) {
    %c0_i32 = arith.constant 0 : i32
    %c0_i32_0 = arith.constant 0 : i32
    return %c0_i32, %arg0 : i32, i32
  }
}

module attributes {stable_mosaic.version = 11 : i64} {
  func.func @_wx_bias_act_kernel(%arg0: i32, %arg1: memref<48x80xbf16, #tpu.memory_space<vmem>>, %arg2: memref<80x128xbf16, #tpu.memory_space<vmem>>, %arg3: memref<48x1xf32, #tpu.memory_space<vmem>>, %arg4: memref<48x128xbf16, #tpu.memory_space<vmem>>) attributes {dimension_semantics = [#tpu.dimension_semantics<parallel>], iteration_bounds = array<i64: 1>, scalar_prefetch = 0 : i64, scratch_operands = 0 : i64, tpu.core_type = #tpu.core_type<tc>, window_params = [{pipeline_mode = #tpu.pipeline_mode<synchronous>, transform_indices = @transform_0, window_bounds = array<i64: 48, 80>}, {transform_indices = @transform_1, window_bounds = array<i64: 80, 128>}, {pipeline_mode = #tpu.pipeline_mode<synchronous>, transform_indices = @transform_2, window_bounds = array<i64: 48, 1>}, {transform_indices = @transform_3, window_bounds = array<i64: 48, 128>}]} {
    %c0 = arith.constant 0 : index
    %c0_0 = arith.constant 0 : index
    %0 = vector.load %arg1[%c0, %c0_0] : memref<48x80xbf16, #tpu.memory_space<vmem>>, vector<48x80xbf16>
    %c0_1 = arith.constant 0 : index
    %c0_2 = arith.constant 0 : index
    %1 = vector.load %arg2[%c0_1, %c0_2] : memref<80x128xbf16, #tpu.memory_space<vmem>>, vector<80x128xbf16>
    %cst = arith.constant dense<0.000000e+00> : vector<48x128xf32>
    %2 = tpu.matmul %0, %1, %cst {dimension_numbers = #tpu.dot_dimension_numbers<[1], [0], [0], [1], [0, 0, 1, 1], [], []>} : vector<48x80xbf16>, vector<80x128xbf16>, vector<48x128xf32> -> vector<48x128xf32>
    %c0_3 = arith.constant 0 : index
    %c0_4 = arith.constant 0 : index
    %3 = vector.load %arg3[%c0_3, %c0_4] : memref<48x1xf32, #tpu.memory_space<vmem>>, vector<48x1xf32>
    %4 = vector.broadcast %3 : vector<48x1xf32> to vector<48x128xf32>
    %5 = arith.addf %2, %4 : vector<48x128xf32>
    %cst_5 = arith.constant 0.000000e+00 : f32
    %6 = vector.broadcast %cst_5 : f32 to vector<48x128xf32>
    %7 = arith.maximumf %5, %6 : vector<48x128xf32>
    %8 = arith.truncf %7 : vector<48x128xf32> to vector<48x128xbf16>
    %c0_6 = arith.constant 0 : index
    %c0_7 = arith.constant 0 : index
    %9 = vector.load %arg4[%c0_6, %c0_7] : memref<48x128xbf16, #tpu.memory_space<vmem>>, vector<48x128xbf16>
    tpu.vector_store %arg4[%c0_6, %c0_7], %8 {strides = array<i32>} : memref<48x128xbf16, #tpu.memory_space<vmem>>, vector<48x128xbf16>,
    return
  }
  func.func @transform_0(%arg0: i32) -> (i32, i32) {
    %c0_i32 = arith.constant 0 : i32
    %c0_i32_0 = arith.constant 0 : i32
    %c0_i32_1 = arith.constant 0 : i32
    return %c0_i32, %c0_i32_0 : i32, i32
  }
  func.func @transform_1(%arg0: i32) -> (i32, i32) {
    %c0_i32 = arith.constant 0 : i32
    %c0_i32_0 = arith.constant 0 : i32
    return %c0_i32, %arg0 : i32, i32
  }
  func.func @transform_2(%arg0: i32) -> (i32, i32) {
    %c0_i32 = arith.constant 0 : i32
    %c0_i32_0 = arith.constant 0 : i32
    %c0_i32_1 = arith.constant 0 : i32
    return %c0_i32, %c0_i32_0 : i32, i32
  }
  func.func @transform_3(%arg0: i32) -> (i32, i32) {
    %c0_i32 = arith.constant 0 : i32
    %c0_i32_0 = arith.constant 0 : i32
    return %c0_i32, %arg0 : i32, i32
  }
}

module attributes {stable_mosaic.version = 11 : i64} {
  func.func @_wx_bias_act_kernel(%arg0: i32, %arg1: memref<16x112xbf16, #tpu.memory_space<vmem>>, %arg2: memref<112x128xbf16, #tpu.memory_space<vmem>>, %arg3: memref<16x1xf32, #tpu.memory_space<vmem>>, %arg4: memref<16x128xf32, #tpu.memory_space<vmem>>) attributes {dimension_semantics = [#tpu.dimension_semantics<parallel>], iteration_bounds = array<i64: 1>, scalar_prefetch = 0 : i64, scratch_operands = 0 : i64, tpu.core_type = #tpu.core_type<tc>, window_params = [{pipeline_mode = #tpu.pipeline_mode<synchronous>, transform_indices = @transform_0, window_bounds = array<i64: 16, 112>}, {transform_indices = @transform_1, window_bounds = array<i64: 112, 128>}, {pipeline_mode = #tpu.pipeline_mode<synchronous>, transform_indices = @transform_2, window_bounds = array<i64: 16, 1>}, {transform_indices = @transform_3, window_bounds = array<i64: 16, 128>}]} {
    %c0 = arith.constant 0 : index
    %c0_0 = arith.constant 0 : index
    %0 = vector.load %arg1[%c0, %c0_0] : memref<16x112xbf16, #tpu.memory_space<vmem>>, vector<16x112xbf16>
    %c0_1 = arith.constant 0 : index
    %c0_2 = arith.constant 0 : index
    %1 = vector.load %arg2[%c0_1, %c0_2] : memref<112x128xbf16, #tpu.memory_space<vmem>>, vector<112x128xbf16>
    %cst = arith.constant dense<0.000000e+00> : vector<16x128xf32>
    %2 = tpu.matmul %0, %1, %cst {dimension_numbers = #tpu.dot_dimension_numbers<[1], [0], [0], [1], [0, 0, 1, 1], [], []>} : vector<16x112xbf16>, vector<112x128xbf16>, vector<16x128xf32> -> vector<16x128xf32>
    %c0_3 = arith.constant 0 : index
    %c0_4 = arith.constant 0 : index
    %3 = vector.load %arg3[%c0_3, %c0_4] : memref<16x1xf32, #tpu.memory_space<vmem>>, vector<16x1xf32>
    %4 = vector.broadcast %3 : vector<16x1xf32> to vector<16x128xf32>
    %5 = arith.addf %2, %4 : vector<16x128xf32>
    %c0_5 = arith.constant 0 : index
    %c0_6 = arith.constant 0 : index
    %6 = vector.load %arg4[%c0_5, %c0_6] : memref<16x128xf32, #tpu.memory_space<vmem>>, vector<16x128xf32>
    tpu.vector_store %arg4[%c0_5, %c0_6], %5 {strides = array<i32>} : memref<16x128xf32, #tpu.memory_space<vmem>>, vector<16x128xf32>,
    return
  }
  func.func @transform_0(%arg0: i32) -> (i32, i32) {
    %c0_i32 = arith.constant 0 : i32
    %c0_i32_0 = arith.constant 0 : i32
    %c0_i32_1 = arith.constant 0 : i32
    return %c0_i32, %c0_i32_0 : i32, i32
  }
  func.func @transform_1(%arg0: i32) -> (i32, i32) {
    %c0_i32 = arith.constant 0 : i32
    %c0_i32_0 = arith.constant 0 : i32
    return %c0_i32, %arg0 : i32, i32
  }
  func.func @transform_2(%arg0: i32) -> (i32, i32) {
    %c0_i32 = arith.constant 0 : i32
    %c0_i32_0 = arith.constant 0 : i32
    %c0_i32_1 = arith.constant 0 : i32
    return %c0_i32, %c0_i32_0 : i32, i32
  }
  func.func @transform_3(%arg0: i32) -> (i32, i32) {
    %c0_i32 = arith.constant 0 : i32
    %c0_i32_0 = arith.constant 0 : i32
    return %c0_i32, %arg0 : i32, i32
  }
}

</mosaic_0001>

<llo_original>
// kernel: forward.7
$region0: #{forward.7}
  #allocation0 [shape = 'u32[]', space=smem, size = 0x4, offset = 0x4, fixed_abs, tag = 'smem constant byte address 0x4 - core index']
  #allocation1 [shape = 'u32[72,128]{1,0:T(1,128)}', space=vmem, size = 0x9000, scoped, tag = 'internal scratch']
  %s0 = inlined_call_operand.vmem [shape: bf16[32,32], index: 0, kind: input, shape index: {}]
  %s1 = inlined_call_operand.vmem [shape: bf16[32,256], index: 1, kind: input, shape index: {}]
  %s2 = inlined_call_operand.vmem [shape: f32[32,1], index: 2, kind: input, shape index: {}]
  %s3 = inlined_call_operand.vmem [shape: bf16[32,256], index: 3, kind: output, shape index: {}]
  %s4 = sld [smem:[#allocation0]]
  $region22: #{forward.7} parent=0
    _
  %s6 = ssub.s32 1, %s4
  %s7 = scalar_select 0, %s6, %s4
  // Predicated region
  $region2: #{forward.7} parent=0 // pred_check
    _
  $region3: #{forward.7} parent=0 // pred_check_branch
    %9 = sbr.rel (0) target = $region5
  $region4: #{forward.7} parent=0 // pred_region
    _
  $region5: #{forward.7} parent=0 // pred_fallthru
    _
  // Predicated region
  $region6: #{forward.7} parent=0 // pred_check
    _
  $region7: #{forward.7} parent=0 // pred_check_branch
    %11 = sbr.rel (0) target = $region9
  $region8: #{forward.7} parent=0 // pred_region
    _
  $region9: #{forward.7} parent=0 // pred_fallthru
    _
  // Predicated region
  $region10: #{forward.7} parent=0 // pred_check
    _
  $region11: #{forward.7} parent=0 // pred_check_branch
    %13 = sbr.rel (0) target = $region13
  $region12: #{forward.7} parent=0 // pred_region
    _
  $region13: #{forward.7} parent=0 // pred_fallthru
    _
  %v15 = vld [vmem:[%s0] sm:$0xf]
  %v16 = vld [vmem:[%s0 + $0x4] sm:$0xf]
  %v17 = vld [vmem:[%s0 + $0x8] sm:$0xf]
  %v18 = vld [vmem:[%s0 + $0xc] sm:$0xf]
  %v19 = vld [vmem:[%s1] sm:$0xff]
  %v20 = vld [vmem:[%s1 + $0x8] sm:$0xff]
  %v21 = vld [vmem:[%s1 + $0x10] sm:$0xff]
  %v22 = vld [vmem:[%s1 + $0x18] sm:$0xff]
  %v23 = vld [vmem:[%s2] sm:$0xff]
  %v24 = vld [vmem:[%s2 + $0x8] sm:$0xff]
  %v25 = vld [vmem:[%s2 + $0x10] sm:$0xff]
  %v26 = vld [vmem:[%s2 + $0x18] sm:$0xff]
  %28 = vset.pattern.permute.xlu0 0
  %29 = vperm.xlu0 %28, %v23
  %v30 = vpop.permute.xlu0 %29
  %33 = vset.pattern.permute.xlu0 0
  %34 = vperm.xlu0 %33, %v24
  %v35 = vpop.permute.xlu0 %34
  %38 = vset.pattern.permute.xlu0 0
  %39 = vperm.xlu0 %38, %v25
  %v40 = vpop.permute.xlu0 %39
  %43 = vset.pattern.permute.xlu0 0
  %44 = vperm.xlu0 %43, %v26
  %v45 = vpop.permute.xlu0 %44
  %v51 = vunpack.c.l.b16 %v15
  %v52 = vunpack.c.l.b16 %v16
  %v53 = vunpack.c.l.b16 %v17
  %v54 = vunpack.c.l.b16 %v18
  %v55 = vpack.c.b16 %v52, %v51
  %v56 = vpack.c.b16 %v54, %v53
  %v61 = vunpack.c.l.b16 %v19
  %v62 = vunpack.c.h.b16 %v19
  %v63 = vunpack.c.l.b16 %v20
  %v64 = vunpack.c.h.b16 %v20
  %v65 = vunpack.c.l.b16 %v21
  %v66 = vunpack.c.h.b16 %v21
  %v67 = vunpack.c.l.b16 %v22
  %v68 = vunpack.c.h.b16 %v22
  %v69 = vpack.c.b16 %v63, %v61
  %v70 = vpack.c.b16 %v64, %v62
  %v71 = vpack.c.b16 %v67, %v65
  %v72 = vpack.c.b16 %v68, %v66
  %vm77 = vcmask 261120
  %v79 = vsel %vm77, %v55, 0
  %v82 = vsel %vm77, %v56, 0
  %84 = vmatpush.bf16.msra.mxu0 0
  %85 = vmatpush.bf16.msra.mxu0 0
  %86 = vmatpush.bf16.msra.mxu0 0
  %87 = vmatpush.bf16.msra.mxu0 0
  %88 = vmatpush.bf16.msra.mxu0 0
  %89 = vmatpush.bf16.msra.mxu0 0
  %90 = vmatpush.bf16.msra.mxu0 %v71
  %91 = vmatpush.bf16.msra.mxu0 %v69
  %92 = vmatmul.bf16.gmra.mxu0 %v79
  %v93 = vpop.f32.mrf.mxu0
  %v94 = vadd.f32 %v30, %v93
  %v95 = vpop.f32.mrf.mxu0
  %v96 = vadd.f32 %v35, %v95
  %97 = vmatmul.bf16.gmra.mxu0 %v82
  %v98 = vpop.f32.mrf.mxu0
  %v99 = vadd.f32 %v40, %v98
  %v100 = vpop.f32.mrf.mxu0
  %v101 = vadd.f32 %v45, %v100
  %102 = vdwg.mxu0
  %103 = vmatpush.bf16.msra.mxu0 0
  %104 = vmatpush.bf16.msra.mxu0 0
  %105 = vmatpush.bf16.msra.mxu0 0
  %106 = vmatpush.bf16.msra.mxu0 0
  %107 = vmatpush.bf16.msra.mxu0 0
  %108 = vmatpush.bf16.msra.mxu0 0
  %109 = vmatpush.bf16.msra.mxu0 %v72
  %110 = vmatpush.bf16.msra.mxu0 %v70
  %111 = vmatmul.bf16.gmra.mxu0 %v79
  %v112 = vpop.f32.mrf.mxu0
  %v113 = vadd.f32 %v30, %v112
  %v114 = vpop.f32.mrf.mxu0
  %v115 = vadd.f32 %v35, %v114
  %116 = vmatmul.bf16.gmra.mxu0 %v82
  %v117 = vpop.f32.mrf.mxu0
  %v118 = vadd.f32 %v40, %v117
  %v119 = vpop.f32.mrf.mxu0
  %v120 = vadd.f32 %v45, %v119
  %121 = vdwg.mxu0
  %v122 = vmax.f32 %v94, 0.0
  %v123 = vmax.f32 %v113, 0.0
  %v124 = vmax.f32 %v96, 0.0
  %v125 = vmax.f32 %v115, 0.0
  %v126 = vmax.f32 %v99, 0.0
  %v127 = vmax.f32 %v118, 0.0
  %v128 = vmax.f32 %v101, 0.0
  %v129 = vmax.f32 %v120, 0.0
  %v130 = vpack.c.bf16 %v123, %v122
  %v131 = vpack.c.bf16 %v125, %v124
  %v132 = vpack.c.bf16 %v127, %v126
  %v133 = vpack.c.bf16 %v129, %v128
  %134 = vst [vmem:[%s3] sm:$0xff] %v130
  %135 = vst [vmem:[%s3 + $0x8] sm:$0xff] %v131
  %136 = vst [vmem:[%s3 + $0x10] sm:$0xff] %v132
  %137 = vst [vmem:[%s3 + $0x18] sm:$0xff] %v133
  // Predicated region
  $region14: #{forward.7} parent=0 // pred_check
    _
  $region15: #{forward.7} parent=0 // pred_check_branch
    %139 = sbr.rel (0) target = $region17
  $region16: #{forward.7} parent=0 // pred_region
    _
  $region17: #{forward.7} parent=0 // pred_fallthru
    _
  // Predicated region
  $region18: #{forward.7} parent=0 // pred_check
    _
  $region19: #{forward.7} parent=0 // pred_check_branch
    %141 = sbr.rel (0) target = $region21
  $region20: #{forward.7} parent=0 // pred_region
    _
  $region21: #{forward.7} parent=0 // pred_fallthru
    _

// kernel: forward.8
$region0: #{forward.8}
  #allocation0 [shape = 'u32[]', space=smem, size = 0x4, offset = 0x4, fixed_abs, tag = 'smem constant byte address 0x4 - core index']
  #allocation1 [shape = 'u32[72,128]{1,0:T(1,128)}', space=vmem, size = 0x9000, scoped, tag = 'internal scratch']
  %s0 = inlined_call_operand.vmem [shape: bf16[32,64], index: 0, kind: input, shape index: {}]
  %s1 = inlined_call_operand.vmem [shape: bf16[64,128], index: 1, kind: input, shape index: {}]
  %s2 = inlined_call_operand.vmem [shape: f32[32,1], index: 2, kind: input, shape index: {}]
  %s3 = inlined_call_operand.vmem [shape: bf16[32,128], index: 3, kind: output, shape index: {}]
  %s4 = sld [smem:[#allocation0]]
  $region22: #{forward.8} parent=0
    _
  %s6 = ssub.s32 1, %s4
  %s7 = scalar_select 0, %s6, %s4
  // Predicated region
  $region2: #{forward.8} parent=0 // pred_check
    _
  $region3: #{forward.8} parent=0 // pred_check_branch
    %9 = sbr.rel (0) target = $region5
  $region4: #{forward.8} parent=0 // pred_region
    _
  $region5: #{forward.8} parent=0 // pred_fallthru
    _
  // Predicated region
  $region6: #{forward.8} parent=0 // pred_check
    _
  $region7: #{forward.8} parent=0 // pred_check_branch
    %11 = sbr.rel (0) target = $region9
  $region8: #{forward.8} parent=0 // pred_region
    _
  $region9: #{forward.8} parent=0 // pred_fallthru
    _
  // Predicated region
  $region10: #{forward.8} parent=0 // pred_check
    _
  $region11: #{forward.8} parent=0 // pred_check_branch
    %13 = sbr.rel (0) target = $region13
  $region12: #{forward.8} parent=0 // pred_region
    _
  $region13: #{forward.8} parent=0 // pred_fallthru
    _
  %v15 = vld [vmem:[%s0] sm:$0xf]
  %v16 = vld [vmem:[%s0 + $0x4] sm:$0xf]
  %v17 = vld [vmem:[%s0 + $0x8] sm:$0xf]
  %v18 = vld [vmem:[%s0 + $0xc] sm:$0xf]
  %v19 = vld [vmem:[%s1] sm:$0xf]
  %v20 = vld [vmem:[%s1 + $0x4] sm:$0xf]
  %v21 = vld [vmem:[%s1 + $0x8] sm:$0xf]
  %v22 = vld [vmem:[%s1 + $0xc] sm:$0xf]
  %v23 = vld [vmem:[%s1 + $0x10] sm:$0xf]
  %v24 = vld [vmem:[%s1 + $0x14] sm:$0xf]
  %v25 = vld [vmem:[%s1 + $0x18] sm:$0xf]
  %v26 = vld [vmem:[%s1 + $0x1c] sm:$0xf]
  %v27 = vld [vmem:[%s2] sm:$0xff]
  %v28 = vld [vmem:[%s2 + $0x8] sm:$0xff]
  %v29 = vld [vmem:[%s2 + $0x10] sm:$0xff]
  %v30 = vld [vmem:[%s2 + $0x18] sm:$0xff]
  %32 = vset.pattern.permute.xlu0 0
  %33 = vperm.xlu0 %32, %v27
  %v34 = vpop.permute.xlu0 %33
  %37 = vset.pattern.permute.xlu0 0
  %38 = vperm.xlu0 %37, %v28
  %v39 = vpop.permute.xlu0 %38
  %42 = vset.pattern.permute.xlu0 0
  %43 = vperm.xlu0 %42, %v29
  %v44 = vpop.permute.xlu0 %43
  %47 = vset.pattern.permute.xlu0 0
  %48 = vperm.xlu0 %47, %v30
  %v49 = vpop.permute.xlu0 %48
  %v55 = vunpack.c.l.b16 %v15
  %v56 = vunpack.c.l.b16 %v16
  %v57 = vunpack.c.l.b16 %v17
  %v58 = vunpack.c.l.b16 %v18
  %v59 = vpack.c.b16 %v56, %v55
  %v60 = vpack.c.b16 %v58, %v57
  %v69 = vunpack.c.l.b16 %v19
  %v70 = vunpack.c.l.b16 %v20
  %v71 = vunpack.c.l.b16 %v21
  %v72 = vunpack.c.l.b16 %v22
  %v73 = vunpack.c.l.b16 %v23
  %v74 = vunpack.c.l.b16 %v24
  %v75 = vunpack.c.l.b16 %v25
  %v76 = vunpack.c.l.b16 %v26
  %v77 = vpack.c.b16 %v70, %v69
  %v78 = vpack.c.b16 %v72, %v71
  %v79 = vpack.c.b16 %v74, %v73
  %v80 = vpack.c.b16 %v76, %v75
  %vm85 = vcmask 523264
  %v87 = vsel %vm85, %v59, 0
  %v90 = vsel %vm85, %v60, 0
  %92 = vmatpush.bf16.msra.mxu0 0
  %93 = vmatpush.bf16.msra.mxu0 0
  %94 = vmatpush.bf16.msra.mxu0 0
  %95 = vmatpush.bf16.msra.mxu0 0
  %96 = vmatpush.bf16.msra.mxu0 %v80
  %97 = vmatpush.bf16.msra.mxu0 %v79
  %98 = vmatpush.bf16.msra.mxu0 %v78
  %99 = vmatpush.bf16.msra.mxu0 %v77
  %100 = vmatmul.bf16.gmra.mxu0 %v87
  %v101 = vpop.f32.mrf.mxu0
  %v102 = vadd.f32 %v34, %v101
  %v103 = vpop.f32.mrf.mxu0
  %v104 = vadd.f32 %v39, %v103
  %105 = vmatmul.bf16.gmra.mxu0 %v90
  %v106 = vpop.f32.mrf.mxu0
  %v107 = vadd.f32 %v44, %v106
  %v108 = vpop.f32.mrf.mxu0
  %v109 = vadd.f32 %v49, %v108
  %110 = vdwg.mxu0
  %v111 = vpack.c.bf16 %v102, %v102
  %v112 = vpack.c.bf16 %v104, %v104
  %v113 = vpack.c.bf16 %v107, %v107
  %v114 = vpack.c.bf16 %v109, %v109
  %115 = vst [vmem:[%s3] sm:$0xf] %v111
  %116 = vst [vmem:[%s3 + $0x4] sm:$0xf] %v112
  %117 = vst [vmem:[%s3 + $0x8] sm:$0xf] %v113
  %118 = vst [vmem:[%s3 + $0xc] sm:$0xf] %v114
  // Predicated region
  $region14: #{forward.8} parent=0 // pred_check
    _
  $region15: #{forward.8} parent=0 // pred_check_branch
    %120 = sbr.rel (0) target = $region17
  $region16: #{forward.8} parent=0 // pred_region
    _
  $region17: #{forward.8} parent=0 // pred_fallthru
    _
  // Predicated region
  $region18: #{forward.8} parent=0 // pred_check
    _
  $region19: #{forward.8} parent=0 // pred_check_branch
    %122 = sbr.rel (0) target = $region21
  $region20: #{forward.8} parent=0 // pred_region
    _
  $region21: #{forward.8} parent=0 // pred_fallthru
    _

// kernel: forward.9
$region0: #{forward.9}
  #allocation0 [shape = 'u32[]', space=smem, size = 0x4, offset = 0x4, fixed_abs, tag = 'smem constant byte address 0x4 - core index']
  #allocation1 [shape = 'u32[72,128]{1,0:T(1,128)}', space=vmem, size = 0x9000, scoped, tag = 'internal scratch']
  %s0 = inlined_call_operand.vmem [shape: bf16[48,544], index: 0, kind: input, shape index: {}]
  %s1 = inlined_call_operand.vmem [shape: bf16[544,128], index: 1, kind: input, shape index: {}]
  %s2 = inlined_call_operand.vmem [shape: f32[48,1], index: 2, kind: input, shape index: {}]
  %s3 = inlined_call_operand.vmem [shape: bf16[48,128], index: 3, kind: output, shape index: {}]
  %s4 = sld [smem:[#allocation0]]
  $region22: #{forward.9} parent=0
    _
  %s6 = ssub.s32 1, %s4
  %s7 = scalar_select 0, %s6, %s4
  // Predicated region
  $region2: #{forward.9} parent=0 // pred_check
    _
  $region3: #{forward.9} parent=0 // pred_check_branch
    %9 = sbr.rel (0) target = $region5
  $region4: #{forward.9} parent=0 // pred_region
    _
  $region5: #{forward.9} parent=0 // pred_fallthru
    _
  // Predicated region
  $region6: #{forward.9} parent=0 // pred_check
    _
  $region7: #{forward.9} parent=0 // pred_check_branch
    %11 = sbr.rel (0) target = $region9
  $region8: #{forward.9} parent=0 // pred_region
    _
  $region9: #{forward.9} parent=0 // pred_fallthru
    _
  // Predicated region
  $region10: #{forward.9} parent=0 // pred_check
    _
  $region11: #{forward.9} parent=0 // pred_check_branch
    %13 = sbr.rel (0) target = $region13
  $region12: #{forward.9} parent=0 // pred_region
    _
  $region13: #{forward.9} parent=0 // pred_fallthru
    _
  %v15 = vld [vmem:[%s0] sm:$0xff]
  %v16 = vld [vmem:[%s0 + $0x8] sm:$0xff]
  %v17 = vld [vmem:[%s0 + $0x10] sm:$0xf]
  %v18 = vld [vmem:[%s0 + $0x14] sm:$0xff]
  %v19 = vld [vmem:[%s0 + $0x1c] sm:$0xff]
  %v20 = vld [vmem:[%s0 + $0x24] sm:$0xf]
  %v21 = vld [vmem:[%s0 + $0x28] sm:$0xff]
  %v22 = vld [vmem:[%s0 + $0x30] sm:$0xff]
  %v23 = vld [vmem:[%s0 + $0x38] sm:$0xf]
  %v24 = vld [vmem:[%s0 + $0x3c] sm:$0xff]
  %v25 = vld [vmem:[%s0 + $0x44] sm:$0xff]
  %v26 = vld [vmem:[%s0 + $0x4c] sm:$0xf]
  %v27 = vld [vmem:[%s0 + $0x50] sm:$0xff]
  %v28 = vld [vmem:[%s0 + $0x58] sm:$0xff]
  %v29 = vld [vmem:[%s0 + $0x60] sm:$0xf]
  %v30 = vld [vmem:[%s0 + $0x64] sm:$0xff]
  %v31 = vld [vmem:[%s0 + $0x6c] sm:$0xff]
  %v32 = vld [vmem:[%s0 + $0x74] sm:$0xf]
  %v33 = vld [vmem:[%s1] sm:$0xf]
  %v34 = vld [vmem:[%s1 + $0x4] sm:$0xf]
  %v35 = vld [vmem:[%s1 + $0x8] sm:$0xf]
  %v36 = vld [vmem:[%s1 + $0xc] sm:$0xf]
  %v37 = vld [vmem:[%s1 + $0x10] sm:$0xf]
  %v38 = vld [vmem:[%s1 + $0x14] sm:$0xf]
  %v39 = vld [vmem:[%s1 + $0x18] sm:$0xf]
  %v40 = vld [vmem:[%s1 + $0x1c] sm:$0xf]
  %v41 = vld [vmem:[%s1 + $0x20] sm:$0xf]
  %v42 = vld [vmem:[%s1 + $0x24] sm:$0xf]
  %v43 = vld [vmem:[%s1 + $0x28] sm:$0xf]
  %v44 = vld [vmem:[%s1 + $0x2c] sm:$0xf]
  %v45 = vld [vmem:[%s1 + $0x30] sm:$0xf]
  %v46 = vld [vmem:[%s1 + $0x34] sm:$0xf]
  %v47 = vld [vmem:[%s1 + $0x38] sm:$0xf]
  %v48 = vld [vmem:[%s1 + $0x3c] sm:$0xf]
  %v49 = vld [vmem:[%s1 + $0x40] sm:$0xf]
  %v50 = vld [vmem:[%s1 + $0x44] sm:$0xf]
  %v51 = vld [vmem:[%s1 + $0x48] sm:$0xf]
  %v52 = vld [vmem:[%s1 + $0x4c] sm:$0xf]
  %v53 = vld [vmem:[%s1 + $0x50] sm:$0xf]
  %v54 = vld [vmem:[%s1 + $0x54] sm:$0xf]
  %v55 = vld [vmem:[%s1 + $0x58] sm:$0xf]
  %v56 = vld [vmem:[%s1 + $0x5c] sm:$0xf]
  %v57 = vld [vmem:[%s1 + $0x60] sm:$0xf]
  %v58 = vld [vmem:[%s1 + $0x64] sm:$0xf]
  %v59 = vld [vmem:[%s1 + $0x68] sm:$0xf]
  %v60 = vld [vmem:[%s1 + $0x6c] sm:$0xf]
  %v61 = vld [vmem:[%s1 + $0x70] sm:$0xf]
  %v62 = vld [vmem:[%s1 + $0x74] sm:$0xf]
  %v63 = vld [vmem:[%s1 + $0x78] sm:$0xf]
  %v64 = vld [vmem:[%s1 + $0x7c] sm:$0xf]
  %v65 = vld [vmem:[%s1 + $0x80] sm:$0xf]
  %v66 = vld [vmem:[%s1 + $0x84] sm:$0xf]
  %v67 = vld [vmem:[%s1 + $0x88] sm:$0xf]
  %v68 = vld [vmem:[%s1 + $0x8c] sm:$0xf]
  %v69 = vld [vmem:[%s1 + $0x90] sm:$0xf]
  %v70 = vld [vmem:[%s1 + $0x94] sm:$0xf]
  %v71 = vld [vmem:[%s1 + $0x98] sm:$0xf]
  %v72 = vld [vmem:[%s1 + $0x9c] sm:$0xf]
  %v73 = vld [vmem:[%s1 + $0xa0] sm:$0xf]
  %v74 = vld [vmem:[%s1 + $0xa4] sm:$0xf]
  %v75 = vld [vmem:[%s1 + $0xa8] sm:$0xf]
  %v76 = vld [vmem:[%s1 + $0xac] sm:$0xf]
  %v77 = vld [vmem:[%s1 + $0xb0] sm:$0xf]
  %v78 = vld [vmem:[%s1 + $0xb4] sm:$0xf]
  %v79 = vld [vmem:[%s1 + $0xb8] sm:$0xf]
  %v80 = vld [vmem:[%s1 + $0xbc] sm:$0xf]
  %v81 = vld [vmem:[%s1 + $0xc0] sm:$0xf]
  %v82 = vld [vmem:[%s1 + $0xc4] sm:$0xf]
  %v83 = vld [vmem:[%s1 + $0xc8] sm:$0xf]
  %v84 = vld [vmem:[%s1 + $0xcc] sm:$0xf]
  %v85 = vld [vmem:[%s1 + $0xd0] sm:$0xf]
  %v86 = vld [vmem:[%s1 + $0xd4] sm:$0xf]
  %v87 = vld [vmem:[%s1 + $0xd8] sm:$0xf]
  %v88 = vld [vmem:[%s1 + $0xdc] sm:$0xf]
  %v89 = vld [vmem:[%s1 + $0xe0] sm:$0xf]
  %v90 = vld [vmem:[%s1 + $0xe4] sm:$0xf]
  %v91 = vld [vmem:[%s1 + $0xe8] sm:$0xf]
  %v92 = vld [vmem:[%s1 + $0xec] sm:$0xf]
  %v93 = vld [vmem:[%s1 + $0xf0] sm:$0xf]
  %v94 = vld [vmem:[%s1 + $0xf4] sm:$0xf]
  %v95 = vld [vmem:[%s1 + $0xf8] sm:$0xf]
  %v96 = vld [vmem:[%s1 + $0xfc] sm:$0xf]
  %v97 = vld [vmem:[%s1 + $0x100] sm:$0xf]
  %v98 = vld [vmem:[%s1 + $0x104] sm:$0xf]
  %v99 = vld [vmem:[%s1 + $0x108] sm:$0xf]
  %v100 = vld [vmem:[%s1 + $0x10c] sm:$0xf]
  %v101 = vld [vmem:[%s2] sm:$0xff]
  %v102 = vld [vmem:[%s2 + $0x8] sm:$0xff]
  %v103 = vld [vmem:[%s2 + $0x10] sm:$0xff]
  %v104 = vld [vmem:[%s2 + $0x18] sm:$0xff]
  %v105 = vld [vmem:[%s2 + $0x20] sm:$0xff]
  %v106 = vld [vmem:[%s2 + $0x28] sm:$0xff]
  %108 = vset.pattern.permute.xlu0 0
  %109 = vperm.xlu0 %108, %v101
  %v110 = vpop.permute.xlu0 %109
  %113 = vset.pattern.permute.xlu0 0
  %114 = vperm.xlu0 %113, %v102
  %v115 = vpop.permute.xlu0 %114
  %118 = vset.pattern.permute.xlu0 0
  %119 = vperm.xlu0 %118, %v103
  %v120 = vpop.permute.xlu0 %119
  %123 = vset.pattern.permute.xlu0 0
  %124 = vperm.xlu0 %123, %v104
  %v125 = vpop.permute.xlu0 %124
  %128 = vset.pattern.permute.xlu0 0
  %129 = vperm.xlu0 %128, %v105
  %v130 = vpop.permute.xlu0 %129
  %133 = vset.pattern.permute.xlu0 0
  %134 = vperm.xlu0 %133, %v106
  %v135 = vpop.permute.xlu0 %134
  %v155 = vunpack.c.l.b16 %v15
  %v156 = vunpack.c.h.b16 %v15
  %v157 = vunpack.c.l.b16 %v16
  %v158 = vunpack.c.h.b16 %v16
  %v159 = vunpack.c.l.b16 %v17
  %v160 = vunpack.c.l.b16 %v18
  %v161 = vunpack.c.h.b16 %v18
  %v162 = vunpack.c.l.b16 %v19
  %v163 = vunpack.c.h.b16 %v19
  %v164 = vunpack.c.l.b16 %v20
  %v165 = vunpack.c.l.b16 %v21
  %v166 = vunpack.c.h.b16 %v21
  %v167 = vunpack.c.l.b16 %v22
  %v168 = vunpack.c.h.b16 %v22
  %v169 = vunpack.c.l.b16 %v23
  %v170 = vunpack.c.l.b16 %v24
  %v171 = vunpack.c.h.b16 %v24
  %v172 = vunpack.c.l.b16 %v25
  %v173 = vunpack.c.h.b16 %v25
  %v174 = vunpack.c.l.b16 %v26
  %v175 = vunpack.c.l.b16 %v27
  %v176 = vunpack.c.h.b16 %v27
  %v177 = vunpack.c.l.b16 %v28
  %v178 = vunpack.c.h.b16 %v28
  %v179 = vunpack.c.l.b16 %v29
  %v180 = vunpack.c.l.b16 %v30
  %v181 = vunpack.c.h.b16 %v30
  %v182 = vunpack.c.l.b16 %v31
  %v183 = vunpack.c.h.b16 %v31
  %v184 = vunpack.c.l.b16 %v32
  %v185 = vpack.c.b16 %v160, %v155
  %v186 = vpack.c.b16 %v161, %v156
  %v187 = vpack.c.b16 %v162, %v157
  %v188 = vpack.c.b16 %v163, %v158
  %v189 = vpack.c.b16 %v164, %v159
  %v190 = vpack.c.b16 %v170, %v165
  %v191 = vpack.c.b16 %v171, %v166
  %v192 = vpack.c.b16 %v172, %v167
  %v193 = vpack.c.b16 %v173, %v168
  %v194 = vpack.c.b16 %v174, %v169
  %v195 = vpack.c.b16 %v180, %v175
  %v196 = vpack.c.b16 %v181, %v176
  %v197 = vpack.c.b16 %v182, %v177
  %v198 = vpack.c.b16 %v183, %v178
  %v199 = vpack.c.b16 %v184, %v179
  %v280 = vunpack.c.l.b16 %v33
  %v281 = vunpack.c.l.b16 %v34
  %v282 = vunpack.c.l.b16 %v35
  %v283 = vunpack.c.l.b16 %v36
  %v284 = vunpack.c.l.b16 %v37
  %v285 = vunpack.c.l.b16 %v38
  %v286 = vunpack.c.l.b16 %v39
  %v287 = vunpack.c.l.b16 %v40
  %v288 = vunpack.c.l.b16 %v41
  %v289 = vunpack.c.l.b16 %v42
  %v290 = vunpack.c.l.b16 %v43
  %v291 = vunpack.c.l.b16 %v44
  %v292 = vunpack.c.l.b16 %v45
  %v293 = vunpack.c.l.b16 %v46
  %v294 = vunpack.c.l.b16 %v47
  %v295 = vunpack.c.l.b16 %v48
  %v296 = vunpack.c.l.b16 %v49
  %v297 = vunpack.c.l.b16 %v50
  %v298 = vunpack.c.l.b16 %v51
  %v299 = vunpack.c.l.b16 %v52
  %v300 = vunpack.c.l.b16 %v53
  %v301 = vunpack.c.l.b16 %v54
  %v302 = vunpack.c.l.b16 %v55
  %v303 = vunpack.c.l.b16 %v56
  %v304 = vunpack.c.l.b16 %v57
  %v305 = vunpack.c.l.b16 %v58
  %v306 = vunpack.c.l.b16 %v59
  %v307 = vunpack.c.l.b16 %v60
  %v308 = vunpack.c.l.b16 %v61
  %v309 = vunpack.c.l.b16 %v62
  %v310 = vunpack.c.l.b16 %v63
  %v311 = vunpack.c.l.b16 %v64
  %v312 = vunpack.c.l.b16 %v65
  %v313 = vunpack.c.l.b16 %v66
  %v314 = vunpack.c.l.b16 %v67
  %v315 = vunpack.c.l.b16 %v68
  %v316 = vunpack.c.l.b16 %v69
  %v317 = vunpack.c.l.b16 %v70
  %v318 = vunpack.c.l.b16 %v71
  %v319 = vunpack.c.l.b16 %v72
  %v320 = vunpack.c.l.b16 %v73
  %v321 = vunpack.c.l.b16 %v74
  %v322 = vunpack.c.l.b16 %v75
  %v323 = vunpack.c.l.b16 %v76
  %v324 = vunpack.c.l.b16 %v77
  %v325 = vunpack.c.l.b16 %v78
  %v326 = vunpack.c.l.b16 %v79
  %v327 = vunpack.c.l.b16 %v80
  %v328 = vunpack.c.l.b16 %v81
  %v329 = vunpack.c.l.b16 %v82
  %v330 = vunpack.c.l.b16 %v83
  %v331 = vunpack.c.l.b16 %v84
  %v332 = vunpack.c.l.b16 %v85
  %v333 = vunpack.c.l.b16 %v86
  %v334 = vunpack.c.l.b16 %v87
  %v335 = vunpack.c.l.b16 %v88
  %v336 = vunpack.c.l.b16 %v89
  %v337 = vunpack.c.l.b16 %v90
  %v338 = vunpack.c.l.b16 %v91
  %v339 = vunpack.c.l.b16 %v92
  %v340 = vunpack.c.l.b16 %v93
  %v341 = vunpack.c.l.b16 %v94
  %v342 = vunpack.c.l.b16 %v95
  %v343 = vunpack.c.l.b16 %v96
  %v344 = vunpack.c.l.b16 %v97
  %v345 = vunpack.c.l.b16 %v98
  %v346 = vunpack.c.l.b16 %v99
  %v347 = vunpack.c.l.b16 %v100
  %v348 = vpack.c.b16 %v281, %v280
  %v349 = vpack.c.b16 %v283, %v282
  %v350 = vpack.c.b16 %v285, %v284
  %v351 = vpack.c.b16 %v287, %v286
  %v352 = vpack.c.b16 %v289, %v288
  %v353 = vpack.c.b16 %v291, %v290
  %v354 = vpack.c.b16 %v293, %v292
  %v355 = vpack.c.b16 %v295, %v294
  %v356 = vpack.c.b16 %v297, %v296
  %v357 = vpack.c.b16 %v299, %v298
  %v358 = vpack.c.b16 %v301, %v300
  %v359 = vpack.c.b16 %v303, %v302
  %v360 = vpack.c.b16 %v305, %v304
  %v361 = vpack.c.b16 %v307, %v306
  %v362 = vpack.c.b16 %v309, %v308
  %v363 = vpack.c.b16 %v311, %v310
  %v364 = vpack.c.b16 %v313, %v312
  %v365 = vpack.c.b16 %v315, %v314
  %v366 = vpack.c.b16 %v317, %v316
  %v367 = vpack.c.b16 %v319, %v318
  %v368 = vpack.c.b16 %v321, %v320
  %v369 = vpack.c.b16 %v323, %v322
  %v370 = vpack.c.b16 %v325, %v324
  %v371 = vpack.c.b16 %v327, %v326
  %v372 = vpack.c.b16 %v329, %v328
  %v373 = vpack.c.b16 %v331, %v330
  %v374 = vpack.c.b16 %v333, %v332
  %v375 = vpack.c.b16 %v335, %v334
  %v376 = vpack.c.b16 %v337, %v336
  %v377 = vpack.c.b16 %v339, %v338
  %v378 = vpack.c.b16 %v341, %v340
  %v379 = vpack.c.b16 %v343, %v342
  %v380 = vpack.c.b16 %v345, %v344
  %v381 = vpack.c.b16 %v347, %v346
  %vm416 = vcmask 261120
  %v418 = vsel %vm416, %v189, 0
  %v421 = vsel %vm416, %v194, 0
  %v424 = vsel %vm416, %v199, 0
  %426 = vmatpush.bf16.msra.mxu0 %v355
  %427 = vmatpush.bf16.msra.mxu0 %v354
  %428 = vmatpush.bf16.msra.mxu0 %v353
  %429 = vmatpush.bf16.msra.mxu0 %v352
  %430 = vmatpush.bf16.msra.mxu0 %v351
  %431 = vmatpush.bf16.msra.mxu0 %v350
  %432 = vmatpush.bf16.msra.mxu0 %v349
  %433 = vmatpush.bf16.msra.mxu0 %v348
  %434 = vmatmul.bf16.gmra.mxu0 %v185
  %v435 = vpop.f32.mrf.mxu0
  %v436 = vadd.f32 %v110, %v435
  %v437 = vpop.f32.mrf.mxu0
  %v438 = vadd.f32 %v115, %v437
  %439 = vmatmul.bf16.gmra.mxu0 %v190
  %v440 = vpop.f32.mrf.mxu0
  %v441 = vadd.f32 %v120, %v440
  %v442 = vpop.f32.mrf.mxu0
  %v443 = vadd.f32 %v125, %v442
  %444 = vmatmul.bf16.gmra.mxu0 %v195
  %v445 = vpop.f32.mrf.mxu0
  %v446 = vadd.f32 %v130, %v445
  %v447 = vpop.f32.mrf.mxu0
  %v448 = vadd.f32 %v135, %v447
  %449 = vdwg.mxu0
  %450 = vmatpush.bf16.msra.mxu0 %v363
  %451 = vmatpush.bf16.msra.mxu0 %v362
  %452 = vmatpush.bf16.msra.mxu0 %v361
  %453 = vmatpush.bf16.msra.mxu0 %v360
  %454 = vmatpush.bf16.msra.mxu0 %v359
  %455 = vmatpush.bf16.msra.mxu0 %v358
  %456 = vmatpush.bf16.msra.mxu0 %v357
  %457 = vmatpush.bf16.msra.mxu0 %v356
  %458 = vmatmul.bf16.gmra.mxu0 %v186
  %v459 = vpop.f32.mrf.mxu0
  %v460 = vadd.f32 %v436, %v459
  %v461 = vpop.f32.mrf.mxu0
  %v462 = vadd.f32 %v438, %v461
  %463 = vmatmul.bf16.gmra.mxu0 %v191
  %v464 = vpop.f32.mrf.mxu0
  %v465 = vadd.f32 %v441, %v464
  %v466 = vpop.f32.mrf.mxu0
  %v467 = vadd.f32 %v443, %v466
  %468 = vmatmul.bf16.gmra.mxu0 %v196
  %v469 = vpop.f32.mrf.mxu0
  %v470 = vadd.f32 %v446, %v469
  %v471 = vpop.f32.mrf.mxu0
  %v472 = vadd.f32 %v448, %v471
  %473 = vdwg.mxu0
  %474 = vmatpush.bf16.msra.mxu0 %v371
  %475 = vmatpush.bf16.msra.mxu0 %v370
  %476 = vmatpush.bf16.msra.mxu0 %v369
  %477 = vmatpush.bf16.msra.mxu0 %v368
  %478 = vmatpush.bf16.msra.mxu0 %v367
  %479 = vmatpush.bf16.msra.mxu0 %v366
  %480 = vmatpush.bf16.msra.mxu0 %v365
  %481 = vmatpush.bf16.msra.mxu0 %v364
  %482 = vmatmul.bf16.gmra.mxu0 %v187
  %v483 = vpop.f32.mrf.mxu0
  %v484 = vadd.f32 %v460, %v483
  %v485 = vpop.f32.mrf.mxu0
  %v486 = vadd.f32 %v462, %v485
  %487 = vmatmul.bf16.gmra.mxu0 %v192
  %v488 = vpop.f32.mrf.mxu0
  %v489 = vadd.f32 %v465, %v488
  %v490 = vpop.f32.mrf.mxu0
  %v491 = vadd.f32 %v467, %v490
  %492 = vmatmul.bf16.gmra.mxu0 %v197
  %v493 = vpop.f32.mrf.mxu0
  %v494 = vadd.f32 %v470, %v493
  %v495 = vpop.f32.mrf.mxu0
  %v496 = vadd.f32 %v472, %v495
  %497 = vdwg.mxu0
  %498 = vmatpush.bf16.msra.mxu0 %v379
  %499 = vmatpush.bf16.msra.mxu0 %v378
  %500 = vmatpush.bf16.msra.mxu0 %v377
  %501 = vmatpush.bf16.msra.mxu0 %v376
  %502 = vmatpush.bf16.msra.mxu0 %v375
  %503 = vmatpush.bf16.msra.mxu0 %v374
  %504 = vmatpush.bf16.msra.mxu0 %v373
  %505 = vmatpush.bf16.msra.mxu0 %v372
  %506 = vmatmul.bf16.gmra.mxu0 %v188
  %v507 = vpop.f32.mrf.mxu0
  %v508 = vadd.f32 %v484, %v507
  %v509 = vpop.f32.mrf.mxu0
  %v510 = vadd.f32 %v486, %v509
  %511 = vmatmul.bf16.gmra.mxu0 %v193
  %v512 = vpop.f32.mrf.mxu0
  %v513 = vadd.f32 %v489, %v512
  %v514 = vpop.f32.mrf.mxu0
  %v515 = vadd.f32 %v491, %v514
  %516 = vmatmul.bf16.gmra.mxu0 %v198
  %v517 = vpop.f32.mrf.mxu0
  %v518 = vadd.f32 %v494, %v517
  %v519 = vpop.f32.mrf.mxu0
  %v520 = vadd.f32 %v496, %v519
  %521 = vdwg.mxu0
  %522 = vmatpush.bf16.msra.mxu0 0
  %523 = vmatpush.bf16.msra.mxu0 0
  %524 = vmatpush.bf16.msra.mxu0 0
  %525 = vmatpush.bf16.msra.mxu0 0
  %526 = vmatpush.bf16.msra.mxu0 0
  %527 = vmatpush.bf16.msra.mxu0 0
  %528 = vmatpush.bf16.msra.mxu0 %v381
  %529 = vmatpush.bf16.msra.mxu0 %v380
  %530 = vmatmul.bf16.gmra.mxu0 %v418
  %v531 = vpop.f32.mrf.mxu0
  %v532 = vadd.f32 %v508, %v531
  %v533 = vpop.f32.mrf.mxu0
  %v534 = vadd.f32 %v510, %v533
  %535 = vmatmul.bf16.gmra.mxu0 %v421
  %v536 = vpop.f32.mrf.mxu0
  %v537 = vadd.f32 %v513, %v536
  %v538 = vpop.f32.mrf.mxu0
  %v539 = vadd.f32 %v515, %v538
  %540 = vmatmul.bf16.gmra.mxu0 %v424
  %v541 = vpop.f32.mrf.mxu0
  %v542 = vadd.f32 %v518, %v541
  %v543 = vpop.f32.mrf.mxu0
  %v544 = vadd.f32 %v520, %v543
  %545 = vdwg.mxu0
  %v546 = vmax.f32 %v532, 0.0
  %v547 = vmax.f32 %v534, 0.0
  %v548 = vmax.f32 %v537, 0.0
  %v549 = vmax.f32 %v539, 0.0
  %v550 = vmax.f32 %v542, 0.0
  %v551 = vmax.f32 %v544, 0.0
  %v552 = vpack.c.bf16 %v546, %v546
  %v553 = vpack.c.bf16 %v547, %v547
  %v554 = vpack.c.bf16 %v548, %v548
  %v555 = vpack.c.bf16 %v549, %v549
  %v556 = vpack.c.bf16 %v550, %v550
  %v557 = vpack.c.bf16 %v551, %v551
  %558 = vst [vmem:[%s3] sm:$0xf] %v552
  %559 = vst [vmem:[%s3 + $0x4] sm:$0xf] %v553
  %560 = vst [vmem:[%s3 + $0x8] sm:$0xf] %v554
  %561 = vst [vmem:[%s3 + $0xc] sm:$0xf] %v555
  %562 = vst [vmem:[%s3 + $0x10] sm:$0xf] %v556
  %563 = vst [vmem:[%s3 + $0x14] sm:$0xf] %v557
  // Predicated region
  $region14: #{forward.9} parent=0 // pred_check
    _
  $region15: #{forward.9} parent=0 // pred_check_branch
    %565 = sbr.rel (0) target = $region17
  $region16: #{forward.9} parent=0 // pred_region
    _
  $region17: #{forward.9} parent=0 // pred_fallthru
    _
  // Predicated region
  $region18: #{forward.9} parent=0 // pred_check
    _
  $region19: #{forward.9} parent=0 // pred_check_branch
    %567 = sbr.rel (0) target = $region21
  $region20: #{forward.9} parent=0 // pred_region
    _
  $region21: #{forward.9} parent=0 // pred_fallthru
    _

// kernel: forward.10
$region0: #{forward.10}
  #allocation0 [shape = 'u32[]', space=smem, size = 0x4, offset = 0x4, fixed_abs, tag = 'smem constant byte address 0x4 - core index']
  #allocation1 [shape = 'u32[72,128]{1,0:T(1,128)}', space=vmem, size = 0x9000, scoped, tag = 'internal scratch']
  %s0 = inlined_call_operand.vmem [shape: bf16[48,112], index: 0, kind: input, shape index: {}]
  %s1 = inlined_call_operand.vmem [shape: bf16[112,128], index: 1, kind: input, shape index: {}]
  %s2 = inlined_call_operand.vmem [shape: f32[48,1], index: 2, kind: input, shape index: {}]
  %s3 = inlined_call_operand.vmem [shape: bf16[48,128], index: 3, kind: output, shape index: {}]
  %s4 = sld [smem:[#allocation0]]
  $region22: #{forward.10} parent=0
    _
  %s6 = ssub.s32 1, %s4
  %s7 = scalar_select 0, %s6, %s4
  // Predicated region
  $region2: #{forward.10} parent=0 // pred_check
    _
  $region3: #{forward.10} parent=0 // pred_check_branch
    %9 = sbr.rel (0) target = $region5
  $region4: #{forward.10} parent=0 // pred_region
    _
  $region5: #{forward.10} parent=0 // pred_fallthru
    _
  // Predicated region
  $region6: #{forward.10} parent=0 // pred_check
    _
  $region7: #{forward.10} parent=0 // pred_check_branch
    %11 = sbr.rel (0) target = $region9
  $region8: #{forward.10} parent=0 // pred_region
    _
  $region9: #{forward.10} parent=0 // pred_fallthru
    _
  // Predicated region
  $region10: #{forward.10} parent=0 // pred_check
    _
  $region11: #{forward.10} parent=0 // pred_check_branch
    %13 = sbr.rel (0) target = $region13
  $region12: #{forward.10} parent=0 // pred_region
    _
  $region13: #{forward.10} parent=0 // pred_fallthru
    _
  %v15 = vld [vmem:[%s0] sm:$0xf]
  %v16 = vld [vmem:[%s0 + $0x4] sm:$0xf]
  %v17 = vld [vmem:[%s0 + $0x8] sm:$0xf]
  %v18 = vld [vmem:[%s0 + $0xc] sm:$0xf]
  %v19 = vld [vmem:[%s0 + $0x10] sm:$0xf]
  %v20 = vld [vmem:[%s0 + $0x14] sm:$0xf]
  %v21 = vld [vmem:[%s1] sm:$0xf]
  %v22 = vld [vmem:[%s1 + $0x4] sm:$0xf]
  %v23 = vld [vmem:[%s1 + $0x8] sm:$0xf]
  %v24 = vld [vmem:[%s1 + $0xc] sm:$0xf]
  %v25 = vld [vmem:[%s1 + $0x10] sm:$0xf]
  %v26 = vld [vmem:[%s1 + $0x14] sm:$0xf]
  %v27 = vld [vmem:[%s1 + $0x18] sm:$0xf]
  %v28 = vld [vmem:[%s1 + $0x1c] sm:$0xf]
  %v29 = vld [vmem:[%s1 + $0x20] sm:$0xf]
  %v30 = vld [vmem:[%s1 + $0x24] sm:$0xf]
  %v31 = vld [vmem:[%s1 + $0x28] sm:$0xf]
  %v32 = vld [vmem:[%s1 + $0x2c] sm:$0xf]
  %v33 = vld [vmem:[%s1 + $0x30] sm:$0xf]
  %v34 = vld [vmem:[%s1 + $0x34] sm:$0xf]
  %v35 = vld [vmem:[%s2] sm:$0xff]
  %v36 = vld [vmem:[%s2 + $0x8] sm:$0xff]
  %v37 = vld [vmem:[%s2 + $0x10] sm:$0xff]
  %v38 = vld [vmem:[%s2 + $0x18] sm:$0xff]
  %v39 = vld [vmem:[%s2 + $0x20] sm:$0xff]
  %v40 = vld [vmem:[%s2 + $0x28] sm:$0xff]
  %42 = vset.pattern.permute.xlu0 0
  %43 = vperm.xlu0 %42, %v35
  %v44 = vpop.permute.xlu0 %43
  %47 = vset.pattern.permute.xlu0 0
  %48 = vperm.xlu0 %47, %v36
  %v49 = vpop.permute.xlu0 %48
  %52 = vset.pattern.permute.xlu0 0
  %53 = vperm.xlu0 %52, %v37
  %v54 = vpop.permute.xlu0 %53
  %57 = vset.pattern.permute.xlu0 0
  %58 = vperm.xlu0 %57, %v38
  %v59 = vpop.permute.xlu0 %58
  %62 = vset.pattern.permute.xlu0 0
  %63 = vperm.xlu0 %62, %v39
  %v64 = vpop.permute.xlu0 %63
  %67 = vset.pattern.permute.xlu0 0
  %68 = vperm.xlu0 %67, %v40
  %v69 = vpop.permute.xlu0 %68
  %v77 = vunpack.c.l.b16 %v15
  %v78 = vunpack.c.l.b16 %v16
  %v79 = vunpack.c.l.b16 %v17
  %v80 = vunpack.c.l.b16 %v18
  %v81 = vunpack.c.l.b16 %v19
  %v82 = vunpack.c.l.b16 %v20
  %v83 = vpack.c.b16 %v78, %v77
  %v84 = vpack.c.b16 %v80, %v79
  %v85 = vpack.c.b16 %v82, %v81
  %v100 = vunpack.c.l.b16 %v21
  %v101 = vunpack.c.l.b16 %v22
  %v102 = vunpack.c.l.b16 %v23
  %v103 = vunpack.c.l.b16 %v24
  %v104 = vunpack.c.l.b16 %v25
  %v105 = vunpack.c.l.b16 %v26
  %v106 = vunpack.c.l.b16 %v27
  %v107 = vunpack.c.l.b16 %v28
  %v108 = vunpack.c.l.b16 %v29
  %v109 = vunpack.c.l.b16 %v30
  %v110 = vunpack.c.l.b16 %v31
  %v111 = vunpack.c.l.b16 %v32
  %v112 = vunpack.c.l.b16 %v33
  %v113 = vunpack.c.l.b16 %v34
  %v114 = vpack.c.b16 %v101, %v100
  %v115 = vpack.c.b16 %v103, %v102
  %v116 = vpack.c.b16 %v105, %v104
  %v117 = vpack.c.b16 %v107, %v106
  %v118 = vpack.c.b16 %v109, %v108
  %v119 = vpack.c.b16 %v111, %v110
  %v120 = vpack.c.b16 %v113, %v112
  %vm128 = vcmask 916480
  %v130 = vsel %vm128, %v83, 0
  %v133 = vsel %vm128, %v84, 0
  %v136 = vsel %vm128, %v85, 0
  %138 = vmatpush.bf16.msra.mxu0 0
  %139 = vmatpush.bf16.msra.mxu0 %v120
  %140 = vmatpush.bf16.msra.mxu0 %v119
  %141 = vmatpush.bf16.msra.mxu0 %v118
  %142 = vmatpush.bf16.msra.mxu0 %v117
  %143 = vmatpush.bf16.msra.mxu0 %v116
  %144 = vmatpush.bf16.msra.mxu0 %v115
  %145 = vmatpush.bf16.msra.mxu0 %v114
  %146 = vmatmul.bf16.gmra.mxu0 %v130
  %v147 = vpop.f32.mrf.mxu0
  %v148 = vadd.f32 %v44, %v147
  %v149 = vpop.f32.mrf.mxu0
  %v150 = vadd.f32 %v49, %v149
  %151 = vmatmul.bf16.gmra.mxu0 %v133
  %v152 = vpop.f32.mrf.mxu0
  %v153 = vadd.f32 %v54, %v152
  %v154 = vpop.f32.mrf.mxu0
  %v155 = vadd.f32 %v59, %v154
  %156 = vmatmul.bf16.gmra.mxu0 %v136
  %v157 = vpop.f32.mrf.mxu0
  %v158 = vadd.f32 %v64, %v157
  %v159 = vpop.f32.mrf.mxu0
  %v160 = vadd.f32 %v69, %v159
  %161 = vdwg.mxu0
  %v162 = vpack.c.bf16 %v148, %v148
  %v163 = vpack.c.bf16 %v150, %v150
  %v164 = vpack.c.bf16 %v153, %v153
  %v165 = vpack.c.bf16 %v155, %v155
  %v166 = vpack.c.bf16 %v158, %v158
  %v167 = vpack.c.bf16 %v160, %v160
  %168 = vst [vmem:[%s3] sm:$0xf] %v162
  %169 = vst [vmem:[%s3 + $0x4] sm:$0xf] %v163
  %170 = vst [vmem:[%s3 + $0x8] sm:$0xf] %v164
  %171 = vst [vmem:[%s3 + $0xc] sm:$0xf] %v165
  %172 = vst [vmem:[%s3 + $0x10] sm:$0xf] %v166
  %173 = vst [vmem:[%s3 + $0x14] sm:$0xf] %v167
  // Predicated region
  $region14: #{forward.10} parent=0 // pred_check
    _
  $region15: #{forward.10} parent=0 // pred_check_branch
    %175 = sbr.rel (0) target = $region17
  $region16: #{forward.10} parent=0 // pred_region
    _
  $region17: #{forward.10} parent=0 // pred_fallthru
    _
  // Predicated region
  $region18: #{forward.10} parent=0 // pred_check
    _
  $region19: #{forward.10} parent=0 // pred_check_branch
    %177 = sbr.rel (0) target = $region21
  $region20: #{forward.10} parent=0 // pred_region
    _
  $region21: #{forward.10} parent=0 // pred_fallthru
    _

// kernel: forward.11
$region0: #{forward.11}
  #allocation0 [shape = 'u32[]', space=smem, size = 0x4, offset = 0x4, fixed_abs, tag = 'smem constant byte address 0x4 - core index']
  #allocation1 [shape = 'u32[72,128]{1,0:T(1,128)}', space=vmem, size = 0x9000, scoped, tag = 'internal scratch']
  %s0 = inlined_call_operand.vmem [shape: bf16[48,112], index: 0, kind: input, shape index: {}]
  %s1 = inlined_call_operand.vmem [shape: bf16[112,128], index: 1, kind: input, shape index: {}]
  %s2 = inlined_call_operand.vmem [shape: f32[48,1], index: 2, kind: input, shape index: {}]
  %s3 = inlined_call_operand.vmem [shape: bf16[48,128], index: 3, kind: output, shape index: {}]
  %s4 = sld [smem:[#allocation0]]
  $region22: #{forward.11} parent=0
    _
  %s6 = ssub.s32 1, %s4
  %s7 = scalar_select 0, %s6, %s4
  // Predicated region
  $region2: #{forward.11} parent=0 // pred_check
    _
  $region3: #{forward.11} parent=0 // pred_check_branch
    %9 = sbr.rel (0) target = $region5
  $region4: #{forward.11} parent=0 // pred_region
    _
  $region5: #{forward.11} parent=0 // pred_fallthru
    _
  // Predicated region
  $region6: #{forward.11} parent=0 // pred_check
    _
  $region7: #{forward.11} parent=0 // pred_check_branch
    %11 = sbr.rel (0) target = $region9
  $region8: #{forward.11} parent=0 // pred_region
    _
  $region9: #{forward.11} parent=0 // pred_fallthru
    _
  // Predicated region
  $region10: #{forward.11} parent=0 // pred_check
    _
  $region11: #{forward.11} parent=0 // pred_check_branch
    %13 = sbr.rel (0) target = $region13
  $region12: #{forward.11} parent=0 // pred_region
    _
  $region13: #{forward.11} parent=0 // pred_fallthru
    _
  %v15 = vld [vmem:[%s0] sm:$0xf]
  %v16 = vld [vmem:[%s0 + $0x4] sm:$0xf]
  %v17 = vld [vmem:[%s0 + $0x8] sm:$0xf]
  %v18 = vld [vmem:[%s0 + $0xc] sm:$0xf]
  %v19 = vld [vmem:[%s0 + $0x10] sm:$0xf]
  %v20 = vld [vmem:[%s0 + $0x14] sm:$0xf]
  %v21 = vld [vmem:[%s1] sm:$0xf]
  %v22 = vld [vmem:[%s1 + $0x4] sm:$0xf]
  %v23 = vld [vmem:[%s1 + $0x8] sm:$0xf]
  %v24 = vld [vmem:[%s1 + $0xc] sm:$0xf]
  %v25 = vld [vmem:[%s1 + $0x10] sm:$0xf]
  %v26 = vld [vmem:[%s1 + $0x14] sm:$0xf]
  %v27 = vld [vmem:[%s1 + $0x18] sm:$0xf]
  %v28 = vld [vmem:[%s1 + $0x1c] sm:$0xf]
  %v29 = vld [vmem:[%s1 + $0x20] sm:$0xf]
  %v30 = vld [vmem:[%s1 + $0x24] sm:$0xf]
  %v31 = vld [vmem:[%s1 + $0x28] sm:$0xf]
  %v32 = vld [vmem:[%s1 + $0x2c] sm:$0xf]
  %v33 = vld [vmem:[%s1 + $0x30] sm:$0xf]
  %v34 = vld [vmem:[%s1 + $0x34] sm:$0xf]
  %v35 = vld [vmem:[%s2] sm:$0xff]
  %v36 = vld [vmem:[%s2 + $0x8] sm:$0xff]
  %v37 = vld [vmem:[%s2 + $0x10] sm:$0xff]
  %v38 = vld [vmem:[%s2 + $0x18] sm:$0xff]
  %v39 = vld [vmem:[%s2 + $0x20] sm:$0xff]
  %v40 = vld [vmem:[%s2 + $0x28] sm:$0xff]
  %42 = vset.pattern.permute.xlu0 0
  %43 = vperm.xlu0 %42, %v35
  %v44 = vpop.permute.xlu0 %43
  %47 = vset.pattern.permute.xlu0 0
  %48 = vperm.xlu0 %47, %v36
  %v49 = vpop.permute.xlu0 %48
  %52 = vset.pattern.permute.xlu0 0
  %53 = vperm.xlu0 %52, %v37
  %v54 = vpop.permute.xlu0 %53
  %57 = vset.pattern.permute.xlu0 0
  %58 = vperm.xlu0 %57, %v38
  %v59 = vpop.permute.xlu0 %58
  %62 = vset.pattern.permute.xlu0 0
  %63 = vperm.xlu0 %62, %v39
  %v64 = vpop.permute.xlu0 %63
  %67 = vset.pattern.permute.xlu0 0
  %68 = vperm.xlu0 %67, %v40
  %v69 = vpop.permute.xlu0 %68
  %v77 = vunpack.c.l.b16 %v15
  %v78 = vunpack.c.l.b16 %v16
  %v79 = vunpack.c.l.b16 %v17
  %v80 = vunpack.c.l.b16 %v18
  %v81 = vunpack.c.l.b16 %v19
  %v82 = vunpack.c.l.b16 %v20
  %v83 = vpack.c.b16 %v78, %v77
  %v84 = vpack.c.b16 %v80, %v79
  %v85 = vpack.c.b16 %v82, %v81
  %v100 = vunpack.c.l.b16 %v21
  %v101 = vunpack.c.l.b16 %v22
  %v102 = vunpack.c.l.b16 %v23
  %v103 = vunpack.c.l.b16 %v24
  %v104 = vunpack.c.l.b16 %v25
  %v105 = vunpack.c.l.b16 %v26
  %v106 = vunpack.c.l.b16 %v27
  %v107 = vunpack.c.l.b16 %v28
  %v108 = vunpack.c.l.b16 %v29
  %v109 = vunpack.c.l.b16 %v30
  %v110 = vunpack.c.l.b16 %v31
  %v111 = vunpack.c.l.b16 %v32
  %v112 = vunpack.c.l.b16 %v33
  %v113 = vunpack.c.l.b16 %v34
  %v114 = vpack.c.b16 %v101, %v100
  %v115 = vpack.c.b16 %v103, %v102
  %v116 = vpack.c.b16 %v105, %v104
  %v117 = vpack.c.b16 %v107, %v106
  %v118 = vpack.c.b16 %v109, %v108
  %v119 = vpack.c.b16 %v111, %v110
  %v120 = vpack.c.b16 %v113, %v112
  %vm128 = vcmask 916480
  %v130 = vsel %vm128, %v83, 0
  %v133 = vsel %vm128, %v84, 0
  %v136 = vsel %vm128, %v85, 0
  %138 = vmatpush.bf16.msra.mxu0 0
  %139 = vmatpush.bf16.msra.mxu0 %v120
  %140 = vmatpush.bf16.msra.mxu0 %v119
  %141 = vmatpush.bf16.msra.mxu0 %v118
  %142 = vmatpush.bf16.msra.mxu0 %v117
  %143 = vmatpush.bf16.msra.mxu0 %v116
  %144 = vmatpush.bf16.msra.mxu0 %v115
  %145 = vmatpush.bf16.msra.mxu0 %v114
  %146 = vmatmul.bf16.gmra.mxu0 %v130
  %v147 = vpop.f32.mrf.mxu0
  %v148 = vadd.f32 %v44, %v147
  %v149 = vpop.f32.mrf.mxu0
  %v150 = vadd.f32 %v49, %v149
  %151 = vmatmul.bf16.gmra.mxu0 %v133
  %v152 = vpop.f32.mrf.mxu0
  %v153 = vadd.f32 %v54, %v152
  %v154 = vpop.f32.mrf.mxu0
  %v155 = vadd.f32 %v59, %v154
  %156 = vmatmul.bf16.gmra.mxu0 %v136
  %v157 = vpop.f32.mrf.mxu0
  %v158 = vadd.f32 %v64, %v157
  %v159 = vpop.f32.mrf.mxu0
  %v160 = vadd.f32 %v69, %v159
  %161 = vdwg.mxu0
  %v162 = vmax.f32 %v148, 0.0
  %v163 = vmax.f32 %v150, 0.0
  %v164 = vmax.f32 %v153, 0.0
  %v165 = vmax.f32 %v155, 0.0
  %v166 = vmax.f32 %v158, 0.0
  %v167 = vmax.f32 %v160, 0.0
  %v168 = vpack.c.bf16 %v162, %v162
  %v169 = vpack.c.bf16 %v163, %v163
  %v170 = vpack.c.bf16 %v164, %v164
  %v171 = vpack.c.bf16 %v165, %v165
  %v172 = vpack.c.bf16 %v166, %v166
  %v173 = vpack.c.bf16 %v167, %v167
  %174 = vst [vmem:[%s3] sm:$0xf] %v168
  %175 = vst [vmem:[%s3 + $0x4] sm:$0xf] %v169
  %176 = vst [vmem:[%s3 + $0x8] sm:$0xf] %v170
  %177 = vst [vmem:[%s3 + $0xc] sm:$0xf] %v171
  %178 = vst [vmem:[%s3 + $0x10] sm:$0xf] %v172
  %179 = vst [vmem:[%s3 + $0x14] sm:$0xf] %v173
  // Predicated region
  $region14: #{forward.11} parent=0 // pred_check
    _
  $region15: #{forward.11} parent=0 // pred_check_branch
    %181 = sbr.rel (0) target = $region17
  $region16: #{forward.11} parent=0 // pred_region
    _
  $region17: #{forward.11} parent=0 // pred_fallthru
    _
  // Predicated region
  $region18: #{forward.11} parent=0 // pred_check
    _
  $region19: #{forward.11} parent=0 // pred_check_branch
    %183 = sbr.rel (0) target = $region21
  $region20: #{forward.11} parent=0 // pred_region
    _
  $region21: #{forward.11} parent=0 // pred_fallthru
    _

// kernel: forward.12
$region0: #{forward.12}
  #allocation0 [shape = 'u32[]', space=smem, size = 0x4, offset = 0x4, fixed_abs, tag = 'smem constant byte address 0x4 - core index']
  #allocation1 [shape = 'u32[72,128]{1,0:T(1,128)}', space=vmem, size = 0x9000, scoped, tag = 'internal scratch']
  %s0 = inlined_call_operand.vmem [shape: bf16[48,80], index: 0, kind: input, shape index: {}]
  %s1 = inlined_call_operand.vmem [shape: bf16[80,128], index: 1, kind: input, shape index: {}]
  %s2 = inlined_call_operand.vmem [shape: f32[48,1], index: 2, kind: input, shape index: {}]
  %s3 = inlined_call_operand.vmem [shape: bf16[48,128], index: 3, kind: output, shape index: {}]
  %s4 = sld [smem:[#allocation0]]
  $region22: #{forward.12} parent=0
    _
  %s6 = ssub.s32 1, %s4
  %s7 = scalar_select 0, %s6, %s4
  // Predicated region
  $region2: #{forward.12} parent=0 // pred_check
    _
  $region3: #{forward.12} parent=0 // pred_check_branch
    %9 = sbr.rel (0) target = $region5
  $region4: #{forward.12} parent=0 // pred_region
    _
  $region5: #{forward.12} parent=0 // pred_fallthru
    _
  // Predicated region
  $region6: #{forward.12} parent=0 // pred_check
    _
  $region7: #{forward.12} parent=0 // pred_check_branch
    %11 = sbr.rel (0) target = $region9
  $region8: #{forward.12} parent=0 // pred_region
    _
  $region9: #{forward.12} parent=0 // pred_fallthru
    _
  // Predicated region
  $region10: #{forward.12} parent=0 // pred_check
    _
  $region11: #{forward.12} parent=0 // pred_check_branch
    %13 = sbr.rel (0) target = $region13
  $region12: #{forward.12} parent=0 // pred_region
    _
  $region13: #{forward.12} parent=0 // pred_fallthru
    _
  %v15 = vld [vmem:[%s0] sm:$0xf]
  %v16 = vld [vmem:[%s0 + $0x4] sm:$0xf]
  %v17 = vld [vmem:[%s0 + $0x8] sm:$0xf]
  %v18 = vld [vmem:[%s0 + $0xc] sm:$0xf]
  %v19 = vld [vmem:[%s0 + $0x10] sm:$0xf]
  %v20 = vld [vmem:[%s0 + $0x14] sm:$0xf]
  %v21 = vld [vmem:[%s1] sm:$0xf]
  %v22 = vld [vmem:[%s1 + $0x4] sm:$0xf]
  %v23 = vld [vmem:[%s1 + $0x8] sm:$0xf]
  %v24 = vld [vmem:[%s1 + $0xc] sm:$0xf]
  %v25 = vld [vmem:[%s1 + $0x10] sm:$0xf]
  %v26 = vld [vmem:[%s1 + $0x14] sm:$0xf]
  %v27 = vld [vmem:[%s1 + $0x18] sm:$0xf]
  %v28 = vld [vmem:[%s1 + $0x1c] sm:$0xf]
  %v29 = vld [vmem:[%s1 + $0x20] sm:$0xf]
  %v30 = vld [vmem:[%s1 + $0x24] sm:$0xf]
  %v31 = vld [vmem:[%s2] sm:$0xff]
  %v32 = vld [vmem:[%s2 + $0x8] sm:$0xff]
  %v33 = vld [vmem:[%s2 + $0x10] sm:$0xff]
  %v34 = vld [vmem:[%s2 + $0x18] sm:$0xff]
  %v35 = vld [vmem:[%s2 + $0x20] sm:$0xff]
  %v36 = vld [vmem:[%s2 + $0x28] sm:$0xff]
  %38 = vset.pattern.permute.xlu0 0
  %39 = vperm.xlu0 %38, %v31
  %v40 = vpop.permute.xlu0 %39
  %43 = vset.pattern.permute.xlu0 0
  %44 = vperm.xlu0 %43, %v32
  %v45 = vpop.permute.xlu0 %44
  %48 = vset.pattern.permute.xlu0 0
  %49 = vperm.xlu0 %48, %v33
  %v50 = vpop.permute.xlu0 %49
  %53 = vset.pattern.permute.xlu0 0
  %54 = vperm.xlu0 %53, %v34
  %v55 = vpop.permute.xlu0 %54
  %58 = vset.pattern.permute.xlu0 0
  %59 = vperm.xlu0 %58, %v35
  %v60 = vpop.permute.xlu0 %59
  %63 = vset.pattern.permute.xlu0 0
  %64 = vperm.xlu0 %63, %v36
  %v65 = vpop.permute.xlu0 %64
  %v73 = vunpack.c.l.b16 %v15
  %v74 = vunpack.c.l.b16 %v16
  %v75 = vunpack.c.l.b16 %v17
  %v76 = vunpack.c.l.b16 %v18
  %v77 = vunpack.c.l.b16 %v19
  %v78 = vunpack.c.l.b16 %v20
  %v79 = vpack.c.b16 %v74, %v73
  %v80 = vpack.c.b16 %v76, %v75
  %v81 = vpack.c.b16 %v78, %v77
  %v92 = vunpack.c.l.b16 %v21
  %v93 = vunpack.c.l.b16 %v22
  %v94 = vunpack.c.l.b16 %v23
  %v95 = vunpack.c.l.b16 %v24
  %v96 = vunpack.c.l.b16 %v25
  %v97 = vunpack.c.l.b16 %v26
  %v98 = vunpack.c.l.b16 %v27
  %v99 = vunpack.c.l.b16 %v28
  %v100 = vunpack.c.l.b16 %v29
  %v101 = vunpack.c.l.b16 %v30
  %v102 = vpack.c.b16 %v93, %v92
  %v103 = vpack.c.b16 %v95, %v94
  %v104 = vpack.c.b16 %v97, %v96
  %v105 = vpack.c.b16 %v99, %v98
  %v106 = vpack.c.b16 %v101, %v100
  %vm112 = vcmask 654336
  %v114 = vsel %vm112, %v79, 0
  %v117 = vsel %vm112, %v80, 0
  %v120 = vsel %vm112, %v81, 0
  %122 = vmatpush.bf16.msra.mxu0 0
  %123 = vmatpush.bf16.msra.mxu0 0
  %124 = vmatpush.bf16.msra.mxu0 0
  %125 = vmatpush.bf16.msra.mxu0 %v106
  %126 = vmatpush.bf16.msra.mxu0 %v105
  %127 = vmatpush.bf16.msra.mxu0 %v104
  %128 = vmatpush.bf16.msra.mxu0 %v103
  %129 = vmatpush.bf16.msra.mxu0 %v102
  %130 = vmatmul.bf16.gmra.mxu0 %v114
  %v131 = vpop.f32.mrf.mxu0
  %v132 = vadd.f32 %v40, %v131
  %v133 = vpop.f32.mrf.mxu0
  %v134 = vadd.f32 %v45, %v133
  %135 = vmatmul.bf16.gmra.mxu0 %v117
  %v136 = vpop.f32.mrf.mxu0
  %v137 = vadd.f32 %v50, %v136
  %v138 = vpop.f32.mrf.mxu0
  %v139 = vadd.f32 %v55, %v138
  %140 = vmatmul.bf16.gmra.mxu0 %v120
  %v141 = vpop.f32.mrf.mxu0
  %v142 = vadd.f32 %v60, %v141
  %v143 = vpop.f32.mrf.mxu0
  %v144 = vadd.f32 %v65, %v143
  %145 = vdwg.mxu0
  %v146 = vmax.f32 %v132, 0.0
  %v147 = vmax.f32 %v134, 0.0
  %v148 = vmax.f32 %v137, 0.0
  %v149 = vmax.f32 %v139, 0.0
  %v150 = vmax.f32 %v142, 0.0
  %v151 = vmax.f32 %v144, 0.0
  %v152 = vpack.c.bf16 %v146, %v146
  %v153 = vpack.c.bf16 %v147, %v147
  %v154 = vpack.c.bf16 %v148, %v148
  %v155 = vpack.c.bf16 %v149, %v149
  %v156 = vpack.c.bf16 %v150, %v150
  %v157 = vpack.c.bf16 %v151, %v151
  %158 = vst [vmem:[%s3] sm:$0xf] %v152
  %159 = vst [vmem:[%s3 + $0x4] sm:$0xf] %v153
  %160 = vst [vmem:[%s3 + $0x8] sm:$0xf] %v154
  %161 = vst [vmem:[%s3 + $0xc] sm:$0xf] %v155
  %162 = vst [vmem:[%s3 + $0x10] sm:$0xf] %v156
  %163 = vst [vmem:[%s3 + $0x14] sm:$0xf] %v157
  // Predicated region
  $region14: #{forward.12} parent=0 // pred_check
    _
  $region15: #{forward.12} parent=0 // pred_check_branch
    %165 = sbr.rel (0) target = $region17
  $region16: #{forward.12} parent=0 // pred_region
    _
  $region17: #{forward.12} parent=0 // pred_fallthru
    _
  // Predicated region
  $region18: #{forward.12} parent=0 // pred_check
    _
  $region19: #{forward.12} parent=0 // pred_check_branch
    %167 = sbr.rel (0) target = $region21
  $region20: #{forward.12} parent=0 // pred_region
    _
  $region21: #{forward.12} parent=0 // pred_fallthru
    _

// kernel: forward.13
$region0: #{forward.13}
  #allocation0 [shape = 'u32[]', space=smem, size = 0x4, offset = 0x4, fixed_abs, tag = 'smem constant byte address 0x4 - core index']
  #allocation1 [shape = 'u32[72,128]{1,0:T(1,128)}', space=vmem, size = 0x9000, scoped, tag = 'internal scratch']
  %s0 = inlined_call_operand.vmem [shape: bf16[16,112], index: 0, kind: input, shape index: {}]
  %s1 = inlined_call_operand.vmem [shape: bf16[112,128], index: 1, kind: input, shape index: {}]
  %s2 = inlined_call_operand.vmem [shape: f32[16,1], index: 2, kind: input, shape index: {}]
  %s3 = inlined_call_operand.vmem [shape: f32[16,128], index: 3, kind: output, shape index: {}]
  %s4 = sld [smem:[#allocation0]]
  $region22: #{forward.13} parent=0
    _
  %s6 = ssub.s32 1, %s4
  %s7 = scalar_select 0, %s6, %s4
  // Predicated region
  $region2: #{forward.13} parent=0 // pred_check
    _
  $region3: #{forward.13} parent=0 // pred_check_branch
    %9 = sbr.rel (0) target = $region5
  $region4: #{forward.13} parent=0 // pred_region
    _
  $region5: #{forward.13} parent=0 // pred_fallthru
    _
  // Predicated region
  $region6: #{forward.13} parent=0 // pred_check
    _
  $region7: #{forward.13} parent=0 // pred_check_branch
    %11 = sbr.rel (0) target = $region9
  $region8: #{forward.13} parent=0 // pred_region
    _
  $region9: #{forward.13} parent=0 // pred_fallthru
    _
  // Predicated region
  $region10: #{forward.13} parent=0 // pred_check
    _
  $region11: #{forward.13} parent=0 // pred_check_branch
    %13 = sbr.rel (0) target = $region13
  $region12: #{forward.13} parent=0 // pred_region
    _
  $region13: #{forward.13} parent=0 // pred_fallthru
    _
  %v15 = vld [vmem:[%s0] sm:$0xf]
  %v16 = vld [vmem:[%s0 + $0x4] sm:$0xf]
  %v17 = vld [vmem:[%s1] sm:$0xf]
  %v18 = vld [vmem:[%s1 + $0x4] sm:$0xf]
  %v19 = vld [vmem:[%s1 + $0x8] sm:$0xf]
  %v20 = vld [vmem:[%s1 + $0xc] sm:$0xf]
  %v21 = vld [vmem:[%s1 + $0x10] sm:$0xf]
  %v22 = vld [vmem:[%s1 + $0x14] sm:$0xf]
  %v23 = vld [vmem:[%s1 + $0x18] sm:$0xf]
  %v24 = vld [vmem:[%s1 + $0x1c] sm:$0xf]
  %v25 = vld [vmem:[%s1 + $0x20] sm:$0xf]
  %v26 = vld [vmem:[%s1 + $0x24] sm:$0xf]
  %v27 = vld [vmem:[%s1 + $0x28] sm:$0xf]
  %v28 = vld [vmem:[%s1 + $0x2c] sm:$0xf]
  %v29 = vld [vmem:[%s1 + $0x30] sm:$0xf]
  %v30 = vld [vmem:[%s1 + $0x34] sm:$0xf]
  %v31 = vld [vmem:[%s2] sm:$0xff]
  %v32 = vld [vmem:[%s2 + $0x8] sm:$0xff]
  %34 = vset.pattern.permute.xlu0 0
  %35 = vperm.xlu0 %34, %v31
  %v36 = vpop.permute.xlu0 %35
  %39 = vset.pattern.permute.xlu0 0
  %40 = vperm.xlu0 %39, %v32
  %v41 = vpop.permute.xlu0 %40
  %v45 = vunpack.c.l.b16 %v15
  %v46 = vunpack.c.l.b16 %v16
  %v47 = vpack.c.b16 %v46, %v45
  %v62 = vunpack.c.l.b16 %v17
  %v63 = vunpack.c.l.b16 %v18
  %v64 = vunpack.c.l.b16 %v19
  %v65 = vunpack.c.l.b16 %v20
  %v66 = vunpack.c.l.b16 %v21
  %v67 = vunpack.c.l.b16 %v22
  %v68 = vunpack.c.l.b16 %v23
  %v69 = vunpack.c.l.b16 %v24
  %v70 = vunpack.c.l.b16 %v25
  %v71 = vunpack.c.l.b16 %v26
  %v72 = vunpack.c.l.b16 %v27
  %v73 = vunpack.c.l.b16 %v28
  %v74 = vunpack.c.l.b16 %v29
  %v75 = vunpack.c.l.b16 %v30
  %v76 = vpack.c.b16 %v63, %v62
  %v77 = vpack.c.b16 %v65, %v64
  %v78 = vpack.c.b16 %v67, %v66
  %v79 = vpack.c.b16 %v69, %v68
  %v80 = vpack.c.b16 %v71, %v70
  %v81 = vpack.c.b16 %v73, %v72
  %v82 = vpack.c.b16 %v75, %v74
  %vm90 = vcmask 916480
  %v92 = vsel %vm90, %v47, 0
  %94 = vmatpush.bf16.msra.mxu0 0
  %95 = vmatpush.bf16.msra.mxu0 %v82
  %96 = vmatpush.bf16.msra.mxu0 %v81
  %97 = vmatpush.bf16.msra.mxu0 %v80
  %98 = vmatpush.bf16.msra.mxu0 %v79
  %99 = vmatpush.bf16.msra.mxu0 %v78
  %100 = vmatpush.bf16.msra.mxu0 %v77
  %101 = vmatpush.bf16.msra.mxu0 %v76
  %102 = vmatmul.bf16.gmra.mxu0 %v92
  %v103 = vpop.f32.mrf.mxu0
  %v104 = vadd.f32 %v36, %v103
  %v105 = vpop.f32.mrf.mxu0
  %v106 = vadd.f32 %v41, %v105
  %107 = vdwg.mxu0
  %108 = vst [vmem:[%s3] sm:$0xff] %v104
  %109 = vst [vmem:[%s3 + $0x8] sm:$0xff] %v106
  // Predicated region
  $region14: #{forward.13} parent=0 // pred_check
    _
  $region15: #{forward.13} parent=0 // pred_check_branch
    %111 = sbr.rel (0) target = $region17
  $region16: #{forward.13} parent=0 // pred_region
    _
  $region17: #{forward.13} parent=0 // pred_fallthru
    _
  // Predicated region
  $region18: #{forward.13} parent=0 // pred_check
    _
  $region19: #{forward.13} parent=0 // pred_check_branch
    %113 = sbr.rel (0) target = $region21
  $region20: #{forward.13} parent=0 // pred_region
    _
  $region21: #{forward.13} parent=0 // pred_fallthru
    _

</llo_original>
